<compile_context>
chip_gen: v7x
topology: tpu7x:2x2x1
jax: 0.10.0
libtpu: 0.0.40
codegen_flags: <defaults>
</compile_context>

<pallas_src>
import jax
import jax.numpy as jnp
from jax.experimental import pallas as pl
from jax.experimental.pallas import tpu as pltpu

C = 128    # padded channel count (lanes/sublanes)
TM = 128   # pixels per grid step


def _fused_conv3_kernel(x_ref, d_ref,
                        w1_ref, b1_ref, w2_ref, b2_ref, w3_ref, b3_ref,
                        o_ref):
    # x_ref : (1, TM)   spatially zero-padded input pixels (lane-dense)
    # d_ref : (1, TM)   ring distance to edge, clipped to [0, 2] (f32)
    # w1/b1 : (C, 1)    layer-1 weight/bias column, channel-padded to 128
    # w2/w3 : (C, C)    layer-2/3 weights, (Cout, Cin), zero-padded to 128x128
    # b2/b3 : (C, 1)
    # o_ref : (C, TM)   final activations, channels-major, lane-dense
    x = x_ref[...]
    d = d_ref[...]

    # ---- layer 1: Cin=1 -> VPU broadcast multiply-add (no MXU) ------------
    a1 = jax.nn.sigmoid(w1_ref[...] * x + b1_ref[...])          # (C, TM)
    a1 = jnp.where(d >= 2.0, a1, 0.0)      # zero pixels outside layer-1 grid

    # ---- layer 2: 128x128 MXU matmul ---------------------------------------
    a2 = jax.nn.sigmoid(
        jnp.dot(w2_ref[...], a1, preferred_element_type=jnp.float32)
        + b2_ref[...])
    a2 = jnp.where(d >= 1.0, a2, 0.0)      # zero pixels outside layer-2 grid

    # ---- layer 3 ------------------------------------------------------------
    o_ref[...] = jax.nn.sigmoid(
        jnp.dot(w3_ref[...], a2, preferred_element_type=jnp.float32)
        + b3_ref[...])


def prepare_params(params):
    """One-time setup: channels-major (Cout, Cin) weights / (Cout, 1) biases,
    zero-padded to 128.  Hoisted out of the per-call jit path."""
    (w1, b1), (w2, b2), (w3, b3) = params   # w stored as (Cin, Cout)
    w1p = jnp.zeros((C, 1), jnp.float32).at[: w1.shape[1], 0].set(w1[0])
    b1p = jnp.zeros((C, 1), jnp.float32).at[: b1.shape[0], 0].set(b1)
    w2p = jnp.zeros((C, C), jnp.float32).at[: w2.shape[1], : w2.shape[0]].set(w2.T)
    b2p = jnp.zeros((C, 1), jnp.float32).at[: b2.shape[0], 0].set(b2)
    w3p = jnp.zeros((C, C), jnp.float32).at[: w3.shape[1], : w3.shape[0]].set(w3.T)
    b3p = b3.reshape(C, 1).astype(jnp.float32)
    return (w1p, b1p, w2p, b2p, w3p, b3p)


@jax.jit
def model_forward(x_nchw, prepped):
    """x_nchw: (1, 1, H, W) f32  ->  (1, 128, H+6, W+6) f32."""
    w1p, b1p, w2p, b2p, w3p, b3p = prepped
    _, _, H, W = x_nchw.shape
    H3, W3 = H + 6, W + 6
    M3 = H3 * W3
    M3p = pl.cdiv(M3, TM) * TM            # pixel count padded to a tile multiple

    # Spatial zero-padding for all three layers, applied once, lane-dense.
    xpad = jnp.pad(x_nchw[0, 0], ((3, 3), (3, 3)))                 # (H3, W3)
    xflat = jnp.pad(xpad.reshape(1, M3), ((0, 0), (0, M3p - M3)))  # (1, M3p)

    # Ring-distance code (constant-folded at compile time: H, W are static).
    r = jnp.arange(H3)[:, None]
    c = jnp.arange(W3)[None, :]
    dist = jnp.minimum(jnp.minimum(r, H3 - 1 - r), jnp.minimum(c, W3 - 1 - c))
    dist = jnp.minimum(dist, 2).astype(jnp.float32).reshape(1, M3)
    dflat = jnp.pad(dist, ((0, 0), (0, M3p - M3)))                 # pad rows -> 0

    tile = lambda i: (0, i)       # blocks marching along the pixel axis
    resident = lambda i: (0, 0)   # weights: same block every step (no re-DMA)

    out_flat = pl.pallas_call(
        _fused_conv3_kernel,
        out_shape=jax.ShapeDtypeStruct((C, M3p), jnp.float32),
        grid=(M3p // TM,),
        in_specs=[
            pl.BlockSpec((1, TM), tile),      # x
            pl.BlockSpec((1, TM), tile),      # ring distance
            pl.BlockSpec((C, 1), resident),   # w1
            pl.BlockSpec((C, 1), resident),   # b1
            pl.BlockSpec((C, C), resident),   # w2
            pl.BlockSpec((C, 1), resident),   # b2
            pl.BlockSpec((C, C), resident),   # w3
            pl.BlockSpec((C, 1), resident),   # b3
        ],
        out_specs=pl.BlockSpec((C, TM), tile),
        compiler_params=pltpu.CompilerParams(
            dimension_semantics=("parallel",)),
        cost_estimate=pl.CostEstimate(
            flops=2 * 2 * M3p * C * C + 6 * M3p * C,
            transcendentals=3 * M3p * C,
            bytes_accessed=4 * (M3p * (C + 2) + 2 * C * C + 4 * C)),
    )(xflat, dflat, w1p, b1p, w2p, b2p, w3p, b3p)

    # Output is already channels-major; drop padded pixels, split H/W.
    y = out_flat[:, :M3].reshape(C, H3, W3)
    return y[None]                                                  # NCHW


def make_params(key):
    """Deterministic params. Conv2d(k=1) weight (Cout, Cin, 1, 1) stored as
    (Cin, Cout); bias (Cout,). Scaled like PyTorch default (~1/sqrt(fan_in))."""
    dims = [(1, 32), (32, 64), (64, 128)]
    params = []
    for cin, cout in dims:
        key, kw, kb = jax.random.split(key, 3)
        scale = 1.0 / jnp.sqrt(jnp.float32(cin))
        w = jax.random.uniform(kw, (cin, cout), jnp.float32, -scale, scale)
        b = jax.random.uniform(kb, (cout,), jnp.float32, -scale, scale)
        params.append((w, b))
    return params


def reference_forward(x_nchw, params):
    """Pure-XLA reference matching the PyTorch module semantics."""
    y = x_nchw
    for w, b in params:
        cin, cout = w.shape
        k = jnp.transpose(w, (1, 0)).reshape(cout, cin, 1, 1)   # OIHW
        y = jax.lax.conv_general_dilated(
            y, k, window_strides=(1, 1), padding=((1, 1), (1, 1)),
            dimension_numbers=("NCHW", "OIHW", "NCHW"),
            precision=jax.lax.Precision.HIGHEST)
        y = jax.nn.sigmoid(y + b.reshape(1, cout, 1, 1))
    return y


if __name__ == "__main__":
    key = jax.random.PRNGKey(0)
    k_in, k_par = jax.random.split(key)

    # SMALL shape consistent with the module's (1, 1, H, W) input.
    H = W = 16
    x1 = jax.random.normal(k_in, (1, 1, H, W), jnp.float32)
    params = make_params(k_par)
    prepped = prepare_params(params)        # one-time padding, outside jit path

    out = model_forward(x1, prepped)
    out = jax.block_until_ready(out)

    assert out.shape == (1, 128, H + 6, W + 6), out.shape
    assert bool(jnp.all(jnp.isfinite(out)))

    ref = reference_forward(x1, params)
    max_err = float(jnp.max(jnp.abs(out - ref)))
    assert max_err < 1e-3, f"max abs err {max_err}"

    print("KERNEL_OK")
</pallas_src>

<mosaic_0001>
module attributes {stable_mosaic.version = 11 : i64} {
  func.func @_fused_conv3_kernel(%arg0: i32, %arg1: memref<1x128xf32, #tpu.memory_space<vmem>>, %arg2: memref<1x128xf32, #tpu.memory_space<vmem>>, %arg3: memref<128x1xf32, #tpu.memory_space<vmem>>, %arg4: memref<128x1xf32, #tpu.memory_space<vmem>>, %arg5: memref<128x128xf32, #tpu.memory_space<vmem>>, %arg6: memref<128x1xf32, #tpu.memory_space<vmem>>, %arg7: memref<128x128xf32, #tpu.memory_space<vmem>>, %arg8: memref<128x1xf32, #tpu.memory_space<vmem>>, %arg9: memref<128x128xf32, #tpu.memory_space<vmem>>) attributes {dimension_semantics = [#tpu.dimension_semantics<parallel>], iteration_bounds = array<i64: 4>, scalar_prefetch = 0 : i64, scratch_operands = 0 : i64, tpu.core_type = #tpu.core_type<tc>, window_params = [{transform_indices = @transform_0, window_bounds = array<i64: 1, 128>}, {transform_indices = @transform_1, window_bounds = array<i64: 1, 128>}, {pipeline_mode = #tpu.pipeline_mode<synchronous>, transform_indices = @transform_2, window_bounds = array<i64: 128, 1>}, {pipeline_mode = #tpu.pipeline_mode<synchronous>, transform_indices = @transform_3, window_bounds = array<i64: 128, 1>}, {pipeline_mode = #tpu.pipeline_mode<synchronous>, transform_indices = @transform_4, window_bounds = array<i64: 128, 128>}, {pipeline_mode = #tpu.pipeline_mode<synchronous>, transform_indices = @transform_5, window_bounds = array<i64: 128, 1>}, {pipeline_mode = #tpu.pipeline_mode<synchronous>, transform_indices = @transform_6, window_bounds = array<i64: 128, 128>}, {pipeline_mode = #tpu.pipeline_mode<synchronous>, transform_indices = @transform_7, window_bounds = array<i64: 128, 1>}, {transform_indices = @transform_8, window_bounds = array<i64: 128, 128>}]} {
    %c0 = arith.constant 0 : index
    %c0_0 = arith.constant 0 : index
    %0 = vector.load %arg1[%c0, %c0_0] : memref<1x128xf32, #tpu.memory_space<vmem>>, vector<1x128xf32>
    %c0_1 = arith.constant 0 : index
    %c0_2 = arith.constant 0 : index
    %1 = vector.load %arg2[%c0_1, %c0_2] : memref<1x128xf32, #tpu.memory_space<vmem>>, vector<1x128xf32>
    %c0_3 = arith.constant 0 : index
    %c0_4 = arith.constant 0 : index
    %2 = vector.load %arg3[%c0_3, %c0_4] : memref<128x1xf32, #tpu.memory_space<vmem>>, vector<128x1xf32>
    %3 = vector.broadcast %2 : vector<128x1xf32> to vector<128x128xf32>
    %4 = vector.broadcast %0 : vector<1x128xf32> to vector<128x128xf32>
    %5 = arith.mulf %3, %4 : vector<128x128xf32>
    %c0_5 = arith.constant 0 : index
    %c0_6 = arith.constant 0 : index
    %6 = vector.load %arg4[%c0_5, %c0_6] : memref<128x1xf32, #tpu.memory_space<vmem>>, vector<128x1xf32>
    %7 = vector.broadcast %6 : vector<128x1xf32> to vector<128x128xf32>
    %8 = arith.addf %5, %7 : vector<128x128xf32>
    %9 = arith.negf %8 : vector<128x128xf32>
    %10 = math.exp %9 : vector<128x128xf32>
    %cst = arith.constant 1.000000e+00 : f32
    %11 = vector.broadcast %cst : f32 to vector<128x128xf32>
    %12 = arith.addf %11, %10 : vector<128x128xf32>
    %13 = arith.divf %11, %12 : vector<128x128xf32>
    %cst_7 = arith.constant 2.000000e+00 : f32
    %14 = vector.broadcast %cst_7 : f32 to vector<1x128xf32>
    %15 = arith.cmpf oge, %1, %14 : vector<1x128xf32>
    %cst_8 = arith.constant 0.000000e+00 : f32
    %16 = vector.shape_cast %15 : vector<1x128xi1> to vector<1x128xi1>
    %17 = vector.broadcast %16 : vector<1x128xi1> to vector<128x128xi1>
    %18 = vector.broadcast %cst_8 : f32 to vector<128x128xf32>
    %19 = arith.select %17, %13, %18 : vector<128x128xi1>, vector<128x128xf32>
    %c0_9 = arith.constant 0 : index
    %c0_10 = arith.constant 0 : index
    %20 = vector.load %arg5[%c0_9, %c0_10] : memref<128x128xf32, #tpu.memory_space<vmem>>, vector<128x128xf32>
    %cst_11 = arith.constant dense<0.000000e+00> : vector<128x128xf32>
    %21 = tpu.matmul %20, %19, %cst_11 {dimension_numbers = #tpu.dot_dimension_numbers<[1], [0], [0], [1], [0, 0, 1, 1], [], []>} : vector<128x128xf32>, vector<128x128xf32>, vector<128x128xf32> -> vector<128x128xf32>
    %c0_12 = arith.constant 0 : index
    %c0_13 = arith.constant 0 : index
    %22 = vector.load %arg6[%c0_12, %c0_13] : memref<128x1xf32, #tpu.memory_space<vmem>>, vector<128x1xf32>
    %23 = vector.broadcast %22 : vector<128x1xf32> to vector<128x128xf32>
    %24 = arith.addf %21, %23 : vector<128x128xf32>
    %25 = arith.negf %24 : vector<128x128xf32>
    %26 = math.exp %25 : vector<128x128xf32>
    %cst_14 = arith.constant 1.000000e+00 : f32
    %27 = vector.broadcast %cst_14 : f32 to vector<128x128xf32>
    %28 = arith.addf %27, %26 : vector<128x128xf32>
    %29 = arith.divf %27, %28 : vector<128x128xf32>
    %cst_15 = arith.constant 1.000000e+00 : f32
    %30 = vector.broadcast %cst_15 : f32 to vector<1x128xf32>
    %31 = arith.cmpf oge, %1, %30 : vector<1x128xf32>
    %cst_16 = arith.constant 0.000000e+00 : f32
    %32 = vector.shape_cast %31 : vector<1x128xi1> to vector<1x128xi1>
    %33 = vector.broadcast %32 : vector<1x128xi1> to vector<128x128xi1>
    %34 = vector.broadcast %cst_16 : f32 to vector<128x128xf32>
    %35 = arith.select %33, %29, %34 : vector<128x128xi1>, vector<128x128xf32>
    %c0_17 = arith.constant 0 : index
    %c0_18 = arith.constant 0 : index
    %36 = vector.load %arg7[%c0_17, %c0_18] : memref<128x128xf32, #tpu.memory_space<vmem>>, vector<128x128xf32>
    %cst_19 = arith.constant dense<0.000000e+00> : vector<128x128xf32>
    %37 = tpu.matmul %36, %35, %cst_19 {dimension_numbers = #tpu.dot_dimension_numbers<[1], [0], [0], [1], [0, 0, 1, 1], [], []>} : vector<128x128xf32>, vector<128x128xf32>, vector<128x128xf32> -> vector<128x128xf32>
    %c0_20 = arith.constant 0 : index
    %c0_21 = arith.constant 0 : index
    %38 = vector.load %arg8[%c0_20, %c0_21] : memref<128x1xf32, #tpu.memory_space<vmem>>, vector<128x1xf32>
    %39 = vector.broadcast %38 : vector<128x1xf32> to vector<128x128xf32>
    %40 = arith.addf %37, %39 : vector<128x128xf32>
    %41 = arith.negf %40 : vector<128x128xf32>
    %42 = math.exp %41 : vector<128x128xf32>
    %cst_22 = arith.constant 1.000000e+00 : f32
    %43 = vector.broadcast %cst_22 : f32 to vector<128x128xf32>
    %44 = arith.addf %43, %42 : vector<128x128xf32>
    %45 = arith.divf %43, %44 : vector<128x128xf32>
    %c0_23 = arith.constant 0 : index
    %c0_24 = arith.constant 0 : index
    %46 = vector.load %arg9[%c0_23, %c0_24] : memref<128x128xf32, #tpu.memory_space<vmem>>, vector<128x128xf32>
    tpu.vector_store %arg9[%c0_23, %c0_24], %45 {strides = array<i32>} : memref<128x128xf32, #tpu.memory_space<vmem>>, vector<128x128xf32>,
    return
  }
  func.func @transform_0(%arg0: i32) -> (i32, i32) {
    %c0_i32 = arith.constant 0 : i32
    %c0_i32_0 = arith.constant 0 : i32
    return %c0_i32, %arg0 : i32, i32
  }
  func.func @transform_1(%arg0: i32) -> (i32, i32) {
    %c0_i32 = arith.constant 0 : i32
    %c0_i32_0 = arith.constant 0 : i32
    return %c0_i32, %arg0 : i32, i32
  }
  func.func @transform_2(%arg0: i32) -> (i32, i32) {
    %c0_i32 = arith.constant 0 : i32
    %c0_i32_0 = arith.constant 0 : i32
    %c0_i32_1 = arith.constant 0 : i32
    return %c0_i32, %c0_i32_0 : i32, i32
  }
  func.func @transform_3(%arg0: i32) -> (i32, i32) {
    %c0_i32 = arith.constant 0 : i32
    %c0_i32_0 = arith.constant 0 : i32
    %c0_i32_1 = arith.constant 0 : i32
    return %c0_i32, %c0_i32_0 : i32, i32
  }
  func.func @transform_4(%arg0: i32) -> (i32, i32) {
    %c0_i32 = arith.constant 0 : i32
    %c0_i32_0 = arith.constant 0 : i32
    %c0_i32_1 = arith.constant 0 : i32
    return %c0_i32, %c0_i32_0 : i32, i32
  }
  func.func @transform_5(%arg0: i32) -> (i32, i32) {
    %c0_i32 = arith.constant 0 : i32
    %c0_i32_0 = arith.constant 0 : i32
    %c0_i32_1 = arith.constant 0 : i32
    return %c0_i32, %c0_i32_0 : i32, i32
  }
  func.func @transform_6(%arg0: i32) -> (i32, i32) {
    %c0_i32 = arith.constant 0 : i32
    %c0_i32_0 = arith.constant 0 : i32
    %c0_i32_1 = arith.constant 0 : i32
    return %c0_i32, %c0_i32_0 : i32, i32
  }
  func.func @transform_7(%arg0: i32) -> (i32, i32) {
    %c0_i32 = arith.constant 0 : i32
    %c0_i32_0 = arith.constant 0 : i32
    %c0_i32_1 = arith.constant 0 : i32
    return %c0_i32, %c0_i32_0 : i32, i32
  }
  func.func @transform_8(%arg0: i32) -> (i32, i32) {
    %c0_i32 = arith.constant 0 : i32
    %c0_i32_0 = arith.constant 0 : i32
    return %c0_i32, %arg0 : i32, i32
  }
}

</mosaic_0001>

<llo_original>
// kernel: model_forward.1
$region0: #{model_forward.1}
  #allocation0 [shape = 'u32[]', space=smem, size = 0x4, offset = 0x4, fixed_abs, tag = 'smem constant byte address 0x4 - core index']
  #allocation1 [shape = 'u32[144,128]{1,0:T(1,128)}', space=vmem, size = 0x12000, scoped, tag = 'internal scratch']
  %s0 = inlined_call_operand.vmem [shape: f32[1,512], index: 0, kind: input, shape index: {}]
  %s1 = inlined_call_operand.vmem [shape: f32[1,512], index: 1, kind: input, shape index: {}]
  %s2 = inlined_call_operand.vmem [shape: f32[128,1], index: 2, kind: input, shape index: {}]
  %s3 = inlined_call_operand.vmem [shape: f32[128,1], index: 3, kind: input, shape index: {}]
  %s4 = inlined_call_operand.vmem [shape: f32[128,128], index: 4, kind: input, shape index: {}]
  %s5 = inlined_call_operand.vmem [shape: f32[128,1], index: 5, kind: input, shape index: {}]
  %s6 = inlined_call_operand.vmem [shape: f32[128,128], index: 6, kind: input, shape index: {}]
  %s7 = inlined_call_operand.vmem [shape: f32[128,1], index: 7, kind: input, shape index: {}]
  %s8 = inlined_call_operand.vmem [shape: f32[128,512], index: 8, kind: output, shape index: {}]
  %s9 = sld [smem:[#allocation0]]
  $region99: #{model_forward.1} parent=0
    _
  %s11 = ssub.s32 1, %s9
  %s12 = scalar_select 0, %s11, %s9
  $region1: #{model_forward.1} parent=0
    #allocation2 [shape = 'u8[131072]{0}', space=vmem, size = 0x20000, scoped, tag = 'output window, operand 0']
    loop: start=0, step=1, limit=6
    $region2: #{model_forward.1} parent=1 // loop_pre_header
      _
    $region3: #{model_forward.1} parent=1 // loop_header
      %s14 = sphi 0, %s18
      %p15 = scmp.ge.s32.totalorder %s14, 6
      %s24 = sphi 0, %s26
      %s27 = sphi 0, %s24
      %s28 = sphi 0, %s27
      %s44 = sphi 0, %s28
      %s50 = sphi 0, %s52
      %s53 = sphi 0, %s50
      %s54 = sphi 0, %s53
      %s70 = sphi 0, %s54
      %s74 = sphi 0, %s74
      %s76 = sphi 0, %s74
      %s77 = sphi 0, %s76
      %s91 = sphi 0, %s77
      %s95 = sphi 0, %s95
      %s97 = sphi 0, %s95
      %s98 = sphi 0, %s97
      %s112 = sphi 0, %s98
      %s116 = sphi 0, %s116
      %s118 = sphi 0, %s116
      %s119 = sphi 0, %s118
      %s133 = sphi 0, %s119
      %s137 = sphi 0, %s137
      %s139 = sphi 0, %s137
      %s140 = sphi 0, %s139
      %s154 = sphi 0, %s140
      %s158 = sphi 0, %s158
      %s160 = sphi 0, %s158
      %s161 = sphi 0, %s160
      %s175 = sphi 0, %s161
      %s179 = sphi 0, %s179
      %s181 = sphi 0, %s179
      %s182 = sphi 0, %s181
      %s196 = sphi 0, %s182
      %s202 = sphi 0, %s204
      %s205 = sphi 0, %s202
      %s206 = sphi 0, %s205
      %s222 = sphi 0, %s206
    $region4: #{model_forward.1} parent=1 // loop_header_branch
      %17 = sbr.rel (%p15) target = $region8
    $region5: #{model_forward.1} parent=1 // loop_body
      %s19 = ssub.s32 %s14, 1
      %s20 = ssub.s32 %s14, 2
      %s21 = sadd.s32 %s14, 1
      %s22 = ssub.s32 %s14, %s21
      %p23 = scmp.eq.s32.totalorder %s22, 0
      %s25 = sadd.s32 %s24, 1
      %s26 = scalar_select %p23, %s24, %s25
      %p29 = pneg %p23
      %p30 = scmp.eq.s32.totalorder %s14, 3
      %p31 = por %p29, %p30
      %p32 = scmp.ne.s32.totalorder %s24, %s27
      %p33 = scmp.eq.s32.totalorder %s14, 0
      %p34 = por %p32, %p33
      %p35 = scmp.ne.s32.totalorder %s24, %s27
      %p36 = scmp.eq.s32.totalorder %s19, 3
      %p37 = por %p35, %p36
      %p38 = scmp.ne.s32.totalorder %s27, %s28
      %p39 = scmp.eq.s32.totalorder %s19, 0
      %p40 = por %p38, %p39
      %p41 = scmp.ne.s32.totalorder %s27, %s28
      %p42 = scmp.eq.s32.totalorder %s20, 3
      %p43 = por %p41, %p42
      %p45 = scmp.ne.s32.totalorder %s28, %s44
      %p46 = scmp.eq.s32.totalorder %s20, 0
      %p47 = por %p45, %p46
      %s48 = ssub.s32 %s14, %s21
      %p49 = scmp.eq.s32.totalorder %s48, 0
      %s51 = sadd.s32 %s50, 1
      %s52 = scalar_select %p49, %s50, %s51
      %p55 = pneg %p49
      %p56 = scmp.eq.s32.totalorder %s14, 3
      %p57 = por %p55, %p56
      %p58 = scmp.ne.s32.totalorder %s50, %s53
      %p59 = scmp.eq.s32.totalorder %s14, 0
      %p60 = por %p58, %p59
      %p61 = scmp.ne.s32.totalorder %s50, %s53
      %p62 = scmp.eq.s32.totalorder %s19, 3
      %p63 = por %p61, %p62
      %p64 = scmp.ne.s32.totalorder %s53, %s54
      %p65 = scmp.eq.s32.totalorder %s19, 0
      %p66 = por %p64, %p65
      %p67 = scmp.ne.s32.totalorder %s53, %s54
      %p68 = scmp.eq.s32.totalorder %s20, 3
      %p69 = por %p67, %p68
      %p71 = scmp.ne.s32.totalorder %s54, %s70
      %p72 = scmp.eq.s32.totalorder %s20, 0
      %p73 = por %p71, %p72
      %s75 = sadd.s32 %s74, 1
      %p78 = scmp.eq.s32.totalorder %s14, 3
      %p79 = scmp.ne.s32.totalorder %s74, %s76
      %p80 = scmp.eq.s32.totalorder %s14, 0
      %p81 = por %p79, %p80
      %p82 = scmp.ne.s32.totalorder %s74, %s76
      %p83 = scmp.eq.s32.totalorder %s19, 3
      %p84 = por %p82, %p83
      %p85 = scmp.ne.s32.totalorder %s76, %s77
      %p86 = scmp.eq.s32.totalorder %s19, 0
      %p87 = por %p85, %p86
      %p88 = scmp.ne.s32.totalorder %s76, %s77
      %p89 = scmp.eq.s32.totalorder %s20, 3
      %p90 = por %p88, %p89
      %p92 = scmp.ne.s32.totalorder %s77, %s91
      %p93 = scmp.eq.s32.totalorder %s20, 0
      %p94 = por %p92, %p93
      %s96 = sadd.s32 %s95, 1
      %p99 = scmp.eq.s32.totalorder %s14, 3
      %p100 = scmp.ne.s32.totalorder %s95, %s97
      %p101 = scmp.eq.s32.totalorder %s14, 0
      %p102 = por %p100, %p101
      %p103 = scmp.ne.s32.totalorder %s95, %s97
      %p104 = scmp.eq.s32.totalorder %s19, 3
      %p105 = por %p103, %p104
      %p106 = scmp.ne.s32.totalorder %s97, %s98
      %p107 = scmp.eq.s32.totalorder %s19, 0
      %p108 = por %p106, %p107
      %p109 = scmp.ne.s32.totalorder %s97, %s98
      %p110 = scmp.eq.s32.totalorder %s20, 3
      %p111 = por %p109, %p110
      %p113 = scmp.ne.s32.totalorder %s98, %s112
      %p114 = scmp.eq.s32.totalorder %s20, 0
      %p115 = por %p113, %p114
      %s117 = sadd.s32 %s116, 1
      %p120 = scmp.eq.s32.totalorder %s14, 3
      %p121 = scmp.ne.s32.totalorder %s116, %s118
      %p122 = scmp.eq.s32.totalorder %s14, 0
      %p123 = por %p121, %p122
      %p124 = scmp.ne.s32.totalorder %s116, %s118
      %p125 = scmp.eq.s32.totalorder %s19, 3
      %p126 = por %p124, %p125
      %p127 = scmp.ne.s32.totalorder %s118, %s119
      %p128 = scmp.eq.s32.totalorder %s19, 0
      %p129 = por %p127, %p128
      %p130 = scmp.ne.s32.totalorder %s118, %s119
      %p131 = scmp.eq.s32.totalorder %s20, 3
      %p132 = por %p130, %p131
      %p134 = scmp.ne.s32.totalorder %s119, %s133
      %p135 = scmp.eq.s32.totalorder %s20, 0
      %p136 = por %p134, %p135
      %s138 = sadd.s32 %s137, 1
      %p141 = scmp.eq.s32.totalorder %s14, 3
      %p142 = scmp.ne.s32.totalorder %s137, %s139
      %p143 = scmp.eq.s32.totalorder %s14, 0
      %p144 = por %p142, %p143
      %p145 = scmp.ne.s32.totalorder %s137, %s139
      %p146 = scmp.eq.s32.totalorder %s19, 3
      %p147 = por %p145, %p146
      %p148 = scmp.ne.s32.totalorder %s139, %s140
      %p149 = scmp.eq.s32.totalorder %s19, 0
      %p150 = por %p148, %p149
      %p151 = scmp.ne.s32.totalorder %s139, %s140
      %p152 = scmp.eq.s32.totalorder %s20, 3
      %p153 = por %p151, %p152
      %p155 = scmp.ne.s32.totalorder %s140, %s154
      %p156 = scmp.eq.s32.totalorder %s20, 0
      %p157 = por %p155, %p156
      %s159 = sadd.s32 %s158, 1
      %p162 = scmp.eq.s32.totalorder %s14, 3
      %p163 = scmp.ne.s32.totalorder %s158, %s160
      %p164 = scmp.eq.s32.totalorder %s14, 0
      %p165 = por %p163, %p164
      %p166 = scmp.ne.s32.totalorder %s158, %s160
      %p167 = scmp.eq.s32.totalorder %s19, 3
      %p168 = por %p166, %p167
      %p169 = scmp.ne.s32.totalorder %s160, %s161
      %p170 = scmp.eq.s32.totalorder %s19, 0
      %p171 = por %p169, %p170
      %p172 = scmp.ne.s32.totalorder %s160, %s161
      %p173 = scmp.eq.s32.totalorder %s20, 3
      %p174 = por %p172, %p173
      %p176 = scmp.ne.s32.totalorder %s161, %s175
      %p177 = scmp.eq.s32.totalorder %s20, 0
      %p178 = por %p176, %p177
      %s180 = sadd.s32 %s179, 1
      %p183 = scmp.eq.s32.totalorder %s14, 3
      %p184 = scmp.ne.s32.totalorder %s179, %s181
      %p185 = scmp.eq.s32.totalorder %s14, 0
      %p186 = por %p184, %p185
      %p187 = scmp.ne.s32.totalorder %s179, %s181
      %p188 = scmp.eq.s32.totalorder %s19, 3
      %p189 = por %p187, %p188
      %p190 = scmp.ne.s32.totalorder %s181, %s182
      %p191 = scmp.eq.s32.totalorder %s19, 0
      %p192 = por %p190, %p191
      %p193 = scmp.ne.s32.totalorder %s181, %s182
      %p194 = scmp.eq.s32.totalorder %s20, 3
      %p195 = por %p193, %p194
      %p197 = scmp.ne.s32.totalorder %s182, %s196
      %p198 = scmp.eq.s32.totalorder %s20, 0
      %p199 = por %p197, %p198
      %s200 = ssub.s32 %s14, %s21
      %p201 = scmp.eq.s32.totalorder %s200, 0
      %s203 = sadd.s32 %s202, 1
      %s204 = scalar_select %p201, %s202, %s203
      %p207 = pneg %p201
      %p208 = scmp.eq.s32.totalorder %s14, 3
      %p209 = por %p207, %p208
      %p210 = scmp.ne.s32.totalorder %s202, %s205
      %p211 = scmp.eq.s32.totalorder %s14, 0
      %p212 = por %p210, %p211
      %p213 = scmp.ne.s32.totalorder %s202, %s205
      %p214 = scmp.eq.s32.totalorder %s19, 3
      %p215 = por %p213, %p214
      %p216 = scmp.ne.s32.totalorder %s205, %s206
      %p217 = scmp.eq.s32.totalorder %s19, 0
      %p218 = por %p216, %p217
      %p219 = scmp.ne.s32.totalorder %s205, %s206
      %p220 = scmp.eq.s32.totalorder %s20, 3
      %p221 = por %p219, %p220
      %p223 = scmp.ne.s32.totalorder %s206, %s222
      %p224 = scmp.eq.s32.totalorder %s20, 0
      %p225 = por %p223, %p224
      %p226 = scmp.le.s32.totalorder 1, %s14
      %p227 = scmp.lt.s32.totalorder %s14, 5
      %p228 = pnand %p226, %p227
      %p229 = pneg %p228
      // Predicated region
      $region9: #{model_forward.1} parent=5 // pred_check
        _
      $region10: #{model_forward.1} parent=5 // pred_check_branch
        %231 = sbr.rel (%p228) target = $region12
      $region11: #{model_forward.1} parent=5 // pred_region
        %s232 = ssub.s32 %s14, 1
        // Predicated region
        $region13: #{model_forward.1} parent=11 // pred_check
          %p233 = pneg %p87
        $region14: #{model_forward.1} parent=11 // pred_check_branch
          %235 = sbr.rel (%p233) target = $region16
        $region15: #{model_forward.1} parent=11 // pred_region
          _
        $region16: #{model_forward.1} parent=11 // pred_fallthru
          _
        // Predicated region
        $region17: #{model_forward.1} parent=11 // pred_check
          %p236 = pneg %p108
        $region18: #{model_forward.1} parent=11 // pred_check_branch
          %238 = sbr.rel (%p236) target = $region20
        $region19: #{model_forward.1} parent=11 // pred_region
          _
        $region20: #{model_forward.1} parent=11 // pred_fallthru
          _
        // Predicated region
        $region21: #{model_forward.1} parent=11 // pred_check
          %p239 = pneg %p129
        $region22: #{model_forward.1} parent=11 // pred_check_branch
          %241 = sbr.rel (%p239) target = $region24
        $region23: #{model_forward.1} parent=11 // pred_region
          _
        $region24: #{model_forward.1} parent=11 // pred_fallthru
          _
        // Predicated region
        $region25: #{model_forward.1} parent=11 // pred_check
          %p242 = pneg %p150
        $region26: #{model_forward.1} parent=11 // pred_check_branch
          %244 = sbr.rel (%p242) target = $region28
        $region27: #{model_forward.1} parent=11 // pred_region
          _
        $region28: #{model_forward.1} parent=11 // pred_fallthru
          _
        // Predicated region
        $region29: #{model_forward.1} parent=11 // pred_check
          %p245 = pneg %p171
        $region30: #{model_forward.1} parent=11 // pred_check_branch
          %247 = sbr.rel (%p245) target = $region32
        $region31: #{model_forward.1} parent=11 // pred_region
          _
        $region32: #{model_forward.1} parent=11 // pred_fallthru
          _
        // Predicated region
        $region33: #{model_forward.1} parent=11 // pred_check
          %p248 = pneg %p192
        $region34: #{model_forward.1} parent=11 // pred_check_branch
          %250 = sbr.rel (%p248) target = $region36
        $region35: #{model_forward.1} parent=11 // pred_region
          _
        $region36: #{model_forward.1} parent=11 // pred_fallthru
          _
      $region12: #{model_forward.1} parent=5 // pred_fallthru
        _
      %p251 = scmp.lt.s32.totalorder %s14, 4
      // Predicated region
      $region37: #{model_forward.1} parent=5 // pred_check
        %p252 = pneg %p251
      $region38: #{model_forward.1} parent=5 // pred_check_branch
        %254 = sbr.rel (%p252) target = $region40
      $region39: #{model_forward.1} parent=5 // pred_region
        // Predicated region
        $region41: #{model_forward.1} parent=39 // pred_check
          %p255 = pneg %p34
        $region42: #{model_forward.1} parent=39 // pred_check_branch
          %257 = sbr.rel (%p255) target = $region44
        $region43: #{model_forward.1} parent=39 // pred_region
          %p258 = scmp.lt.s32.totalorder %s14, 3
          %s259 = scalar_select %p258, %s14, 3
          %s260 = scalar_lea.vmem %s0, %s259
        $region44: #{model_forward.1} parent=39 // pred_fallthru
          _
        // Predicated region
        $region45: #{model_forward.1} parent=39 // pred_check
          %p261 = pneg %p60
        $region46: #{model_forward.1} parent=39 // pred_check_branch
          %263 = sbr.rel (%p261) target = $region48
        $region47: #{model_forward.1} parent=39 // pred_region
          %p264 = scmp.lt.s32.totalorder %s14, 3
          %s265 = scalar_select %p264, %s14, 3
          %s266 = scalar_lea.vmem %s1, %s265
        $region48: #{model_forward.1} parent=39 // pred_fallthru
          _
      $region40: #{model_forward.1} parent=5 // pred_fallthru
        _
      %p267 = scmp.le.s32.totalorder 1, %s14
      %p268 = scmp.lt.s32.totalorder %s14, 5
      %p269 = pnand %p267, %p268
      %p270 = pneg %p269
      // Predicated region
      $region49: #{model_forward.1} parent=5 // pred_check
        _
      $region50: #{model_forward.1} parent=5 // pred_check_branch
        %272 = sbr.rel (%p269) target = $region52
      $region51: #{model_forward.1} parent=5 // pred_region
        %s273 = ssub.s32 %s14, 1
        %p274 = scmp.lt.s32.totalorder %s19, 3
        %s275 = scalar_select %p274, %s19, 3
        %s276 = scalar_lea.vmem %s0, %s275
        %p277 = pneg %p40
        %p278 = pneg %p37
        %p279 = scmp.lt.s32.totalorder %s19, 3
        %s280 = scalar_select %p279, %s19, 3
        %s281 = scalar_lea.vmem %s1, %s280
        %p282 = pneg %p66
        %p283 = pneg %p63
        %p284 = pneg %p87
        %p285 = pneg %p84
        %p286 = pneg %p108
        %p287 = pneg %p105
        %p288 = pneg %p129
        %p289 = pneg %p126
        %p290 = pneg %p150
        %p291 = pneg %p147
        %p292 = pneg %p171
        %p293 = pneg %p168
        %p294 = pneg %p192
        %p295 = pneg %p189
        %p296 = pneg %p218
        %p297 = pneg %p215
        %s298 = sand.u32 %s205, 1
        %s299 = sand.u32 %s205, 1
        %s300 = smul.addr %s299, 128
        %s301 = scalar_lea.vmem [#allocation2], %s300
        %p302 = scmp.lt.s32.totalorder %s19, 3
        %s303 = scalar_select %p302, %s19, 3
        %s304 = scalar_lea.vmem %s0, %s303
        %p305 = scmp.lt.s32.totalorder %s19, 3
        %s306 = scalar_select %p305, %s19, 3
        %s307 = scalar_lea.vmem %s1, %s306
        %v308 = vld [vmem:[%s304] sm:$0x1]
        %v309 = vld [vmem:[%s307] sm:$0x1]
        %v310 = vld [vmem:[%s2] sm:$0xff]
        %v311 = vld [vmem:[%s2 + $0x8] sm:$0xff]
        %v312 = vld [vmem:[%s2 + $0x10] sm:$0xff]
        %v313 = vld [vmem:[%s2 + $0x18] sm:$0xff]
        %v314 = vld [vmem:[%s2 + $0x20] sm:$0xff]
        %v315 = vld [vmem:[%s2 + $0x28] sm:$0xff]
        %v316 = vld [vmem:[%s2 + $0x30] sm:$0xff]
        %v317 = vld [vmem:[%s2 + $0x38] sm:$0xff]
        %v318 = vld [vmem:[%s2 + $0x40] sm:$0xff]
        %v319 = vld [vmem:[%s2 + $0x48] sm:$0xff]
        %v320 = vld [vmem:[%s2 + $0x50] sm:$0xff]
        %v321 = vld [vmem:[%s2 + $0x58] sm:$0xff]
        %v322 = vld [vmem:[%s2 + $0x60] sm:$0xff]
        %v323 = vld [vmem:[%s2 + $0x68] sm:$0xff]
        %v324 = vld [vmem:[%s2 + $0x70] sm:$0xff]
        %v325 = vld [vmem:[%s2 + $0x78] sm:$0xff]
        %327 = vset.pattern.permute.xlu0 0
        %328 = vperm.xlu0 %327, %v310
        %v329 = vpop.permute.xlu0 %328
        %332 = vset.pattern.permute.xlu0 0
        %333 = vperm.xlu0 %332, %v311
        %v334 = vpop.permute.xlu0 %333
        %337 = vset.pattern.permute.xlu0 0
        %338 = vperm.xlu0 %337, %v312
        %v339 = vpop.permute.xlu0 %338
        %342 = vset.pattern.permute.xlu0 0
        %343 = vperm.xlu0 %342, %v313
        %v344 = vpop.permute.xlu0 %343
        %347 = vset.pattern.permute.xlu0 0
        %348 = vperm.xlu0 %347, %v314
        %v349 = vpop.permute.xlu0 %348
        %352 = vset.pattern.permute.xlu0 0
        %353 = vperm.xlu0 %352, %v315
        %v354 = vpop.permute.xlu0 %353
        %357 = vset.pattern.permute.xlu0 0
        %358 = vperm.xlu0 %357, %v316
        %v359 = vpop.permute.xlu0 %358
        %362 = vset.pattern.permute.xlu0 0
        %363 = vperm.xlu0 %362, %v317
        %v364 = vpop.permute.xlu0 %363
        %367 = vset.pattern.permute.xlu0 0
        %368 = vperm.xlu0 %367, %v318
        %v369 = vpop.permute.xlu0 %368
        %372 = vset.pattern.permute.xlu0 0
        %373 = vperm.xlu0 %372, %v319
        %v374 = vpop.permute.xlu0 %373
        %377 = vset.pattern.permute.xlu0 0
        %378 = vperm.xlu0 %377, %v320
        %v379 = vpop.permute.xlu0 %378
        %382 = vset.pattern.permute.xlu0 0
        %383 = vperm.xlu0 %382, %v321
        %v384 = vpop.permute.xlu0 %383
        %387 = vset.pattern.permute.xlu0 0
        %388 = vperm.xlu0 %387, %v322
        %v389 = vpop.permute.xlu0 %388
        %392 = vset.pattern.permute.xlu0 0
        %393 = vperm.xlu0 %392, %v323
        %v394 = vpop.permute.xlu0 %393
        %397 = vset.pattern.permute.xlu0 0
        %398 = vperm.xlu0 %397, %v324
        %v399 = vpop.permute.xlu0 %398
        %402 = vset.pattern.permute.xlu0 0
        %403 = vperm.xlu0 %402, %v325
        %v404 = vpop.permute.xlu0 %403
        %v407 = vlaneseq
        %v408 = vshrl.u32 %v407, 7
        %v409 = vsub.s32 0, %v408
        %v410 = vrot.slane %v308, %v409
        %v412 = vmul.f32 %v329, %v410
        %v413 = vmul.f32 %v334, %v410
        %v414 = vmul.f32 %v339, %v410
        %v415 = vmul.f32 %v344, %v410
        %v416 = vmul.f32 %v349, %v410
        %v417 = vmul.f32 %v354, %v410
        %v418 = vmul.f32 %v359, %v410
        %v419 = vmul.f32 %v364, %v410
        %v420 = vmul.f32 %v369, %v410
        %v421 = vmul.f32 %v374, %v410
        %v422 = vmul.f32 %v379, %v410
        %v423 = vmul.f32 %v384, %v410
        %v424 = vmul.f32 %v389, %v410
        %v425 = vmul.f32 %v394, %v410
        %v426 = vmul.f32 %v399, %v410
        %v427 = vmul.f32 %v404, %v410
        %v428 = vld [vmem:[%s3] sm:$0xff]
        %v429 = vld [vmem:[%s3 + $0x8] sm:$0xff]
        %v430 = vld [vmem:[%s3 + $0x10] sm:$0xff]
        %v431 = vld [vmem:[%s3 + $0x18] sm:$0xff]
        %v432 = vld [vmem:[%s3 + $0x20] sm:$0xff]
        %v433 = vld [vmem:[%s3 + $0x28] sm:$0xff]
        %v434 = vld [vmem:[%s3 + $0x30] sm:$0xff]
        %v435 = vld [vmem:[%s3 + $0x38] sm:$0xff]
        %v436 = vld [vmem:[%s3 + $0x40] sm:$0xff]
        %v437 = vld [vmem:[%s3 + $0x48] sm:$0xff]
        %v438 = vld [vmem:[%s3 + $0x50] sm:$0xff]
        %v439 = vld [vmem:[%s3 + $0x58] sm:$0xff]
        %v440 = vld [vmem:[%s3 + $0x60] sm:$0xff]
        %v441 = vld [vmem:[%s3 + $0x68] sm:$0xff]
        %v442 = vld [vmem:[%s3 + $0x70] sm:$0xff]
        %v443 = vld [vmem:[%s3 + $0x78] sm:$0xff]
        %445 = vset.pattern.permute.xlu0 0
        %446 = vperm.xlu0 %445, %v428
        %v447 = vpop.permute.xlu0 %446
        %450 = vset.pattern.permute.xlu0 0
        %451 = vperm.xlu0 %450, %v429
        %v452 = vpop.permute.xlu0 %451
        %455 = vset.pattern.permute.xlu0 0
        %456 = vperm.xlu0 %455, %v430
        %v457 = vpop.permute.xlu0 %456
        %460 = vset.pattern.permute.xlu0 0
        %461 = vperm.xlu0 %460, %v431
        %v462 = vpop.permute.xlu0 %461
        %465 = vset.pattern.permute.xlu0 0
        %466 = vperm.xlu0 %465, %v432
        %v467 = vpop.permute.xlu0 %466
        %470 = vset.pattern.permute.xlu0 0
        %471 = vperm.xlu0 %470, %v433
        %v472 = vpop.permute.xlu0 %471
        %475 = vset.pattern.permute.xlu0 0
        %476 = vperm.xlu0 %475, %v434
        %v477 = vpop.permute.xlu0 %476
        %480 = vset.pattern.permute.xlu0 0
        %481 = vperm.xlu0 %480, %v435
        %v482 = vpop.permute.xlu0 %481
        %485 = vset.pattern.permute.xlu0 0
        %486 = vperm.xlu0 %485, %v436
        %v487 = vpop.permute.xlu0 %486
        %490 = vset.pattern.permute.xlu0 0
        %491 = vperm.xlu0 %490, %v437
        %v492 = vpop.permute.xlu0 %491
        %495 = vset.pattern.permute.xlu0 0
        %496 = vperm.xlu0 %495, %v438
        %v497 = vpop.permute.xlu0 %496
        %500 = vset.pattern.permute.xlu0 0
        %501 = vperm.xlu0 %500, %v439
        %v502 = vpop.permute.xlu0 %501
        %505 = vset.pattern.permute.xlu0 0
        %506 = vperm.xlu0 %505, %v440
        %v507 = vpop.permute.xlu0 %506
        %510 = vset.pattern.permute.xlu0 0
        %511 = vperm.xlu0 %510, %v441
        %v512 = vpop.permute.xlu0 %511
        %515 = vset.pattern.permute.xlu0 0
        %516 = vperm.xlu0 %515, %v442
        %v517 = vpop.permute.xlu0 %516
        %520 = vset.pattern.permute.xlu0 0
        %521 = vperm.xlu0 %520, %v443
        %v522 = vpop.permute.xlu0 %521
        %v524 = vadd.f32 %v412, %v447
        %v525 = vadd.f32 %v413, %v452
        %v526 = vadd.f32 %v414, %v457
        %v527 = vadd.f32 %v415, %v462
        %v528 = vadd.f32 %v416, %v467
        %v529 = vadd.f32 %v417, %v472
        %v530 = vadd.f32 %v418, %v477
        %v531 = vadd.f32 %v419, %v482
        %v532 = vadd.f32 %v420, %v487
        %v533 = vadd.f32 %v421, %v492
        %v534 = vadd.f32 %v422, %v497
        %v535 = vadd.f32 %v423, %v502
        %v536 = vadd.f32 %v424, %v507
        %v537 = vadd.f32 %v425, %v512
        %v538 = vadd.f32 %v426, %v517
        %v539 = vadd.f32 %v427, %v522
        %v540 = vxor.u32 %v524, 2147483648
        %v541 = vxor.u32 %v525, 2147483648
        %v542 = vxor.u32 %v526, 2147483648
        %v543 = vxor.u32 %v527, 2147483648
        %v544 = vxor.u32 %v528, 2147483648
        %v545 = vxor.u32 %v529, 2147483648
        %v546 = vxor.u32 %v530, 2147483648
        %v547 = vxor.u32 %v531, 2147483648
        %v548 = vxor.u32 %v532, 2147483648
        %v549 = vxor.u32 %v533, 2147483648
        %v550 = vxor.u32 %v534, 2147483648
        %v551 = vxor.u32 %v535, 2147483648
        %v552 = vxor.u32 %v536, 2147483648
        %v553 = vxor.u32 %v537, 2147483648
        %v554 = vxor.u32 %v538, 2147483648
        %v555 = vxor.u32 %v539, 2147483648
        %v556 = vmul.f32 %v540, 1.442695
        %v557 = vpow.pop %v556
        %v558 = vmul.f32 %v541, 1.442695
        %v559 = vpow.pop %v558
        %v560 = vmul.f32 %v542, 1.442695
        %v561 = vpow.pop %v560
        %v562 = vmul.f32 %v543, 1.442695
        %v563 = vpow.pop %v562
        %v564 = vmul.f32 %v544, 1.442695
        %v565 = vpow.pop %v564
        %v566 = vmul.f32 %v545, 1.442695
        %v567 = vpow.pop %v566
        %v568 = vmul.f32 %v546, 1.442695
        %v569 = vpow.pop %v568
        %v570 = vmul.f32 %v547, 1.442695
        %v571 = vpow.pop %v570
        %v572 = vmul.f32 %v548, 1.442695
        %v573 = vpow.pop %v572
        %v574 = vmul.f32 %v549, 1.442695
        %v575 = vpow.pop %v574
        %v576 = vmul.f32 %v550, 1.442695
        %v577 = vpow.pop %v576
        %v578 = vmul.f32 %v551, 1.442695
        %v579 = vpow.pop %v578
        %v580 = vmul.f32 %v552, 1.442695
        %v581 = vpow.pop %v580
        %v582 = vmul.f32 %v553, 1.442695
        %v583 = vpow.pop %v582
        %v584 = vmul.f32 %v554, 1.442695
        %v585 = vpow.pop %v584
        %v586 = vmul.f32 %v555, 1.442695
        %v587 = vpow.pop %v586
        %v588 = vadd.f32 %v557, 1.0
        %v589 = vadd.f32 %v559, 1.0
        %v590 = vadd.f32 %v561, 1.0
        %v591 = vadd.f32 %v563, 1.0
        %v592 = vadd.f32 %v565, 1.0
        %v593 = vadd.f32 %v567, 1.0
        %v594 = vadd.f32 %v569, 1.0
        %v595 = vadd.f32 %v571, 1.0
        %v596 = vadd.f32 %v573, 1.0
        %v597 = vadd.f32 %v575, 1.0
        %v598 = vadd.f32 %v577, 1.0
        %v599 = vadd.f32 %v579, 1.0
        %v600 = vadd.f32 %v581, 1.0
        %v601 = vadd.f32 %v583, 1.0
        %v602 = vadd.f32 %v585, 1.0
        %v603 = vadd.f32 %v587, 1.0
        %v604 = vrcp.pop %v588
        %v605 = vmul.f32 1.0, %v604
        %v606 = vrcp.pop %v589
        %v607 = vmul.f32 1.0, %v606
        %v608 = vrcp.pop %v590
        %v609 = vmul.f32 1.0, %v608
        %v610 = vrcp.pop %v591
        %v611 = vmul.f32 1.0, %v610
        %v612 = vrcp.pop %v592
        %v613 = vmul.f32 1.0, %v612
        %v614 = vrcp.pop %v593
        %v615 = vmul.f32 1.0, %v614
        %v616 = vrcp.pop %v594
        %v617 = vmul.f32 1.0, %v616
        %v618 = vrcp.pop %v595
        %v619 = vmul.f32 1.0, %v618
        %v620 = vrcp.pop %v596
        %v621 = vmul.f32 1.0, %v620
        %v622 = vrcp.pop %v597
        %v623 = vmul.f32 1.0, %v622
        %v624 = vrcp.pop %v598
        %v625 = vmul.f32 1.0, %v624
        %v626 = vrcp.pop %v599
        %v627 = vmul.f32 1.0, %v626
        %v628 = vrcp.pop %v600
        %v629 = vmul.f32 1.0, %v628
        %v630 = vrcp.pop %v601
        %v631 = vmul.f32 1.0, %v630
        %v632 = vrcp.pop %v602
        %v633 = vmul.f32 1.0, %v632
        %v634 = vrcp.pop %v603
        %v635 = vmul.f32 1.0, %v634
        %vm636 = vcmp.ge.f32.partialorder %v309, 2.0
        %v637 = vsel %vm636, 1, 0
        %v638 = vlaneseq
        %v639 = vshrl.u32 %v638, 7
        %v640 = vsub.s32 0, %v639
        %v641 = vrot.slane %v637, %v640
        %vm642 = vcmp.eq.s32.totalorder %v641, 1
        %v643 = vsel %vm642, %v605, 0.0
        %v644 = vsel %vm642, %v607, 0.0
        %v645 = vsel %vm642, %v609, 0.0
        %v646 = vsel %vm642, %v611, 0.0
        %v647 = vsel %vm642, %v613, 0.0
        %v648 = vsel %vm642, %v615, 0.0
        %v649 = vsel %vm642, %v617, 0.0
        %v650 = vsel %vm642, %v619, 0.0
        %v651 = vsel %vm642, %v621, 0.0
        %v652 = vsel %vm642, %v623, 0.0
        %v653 = vsel %vm642, %v625, 0.0
        %v654 = vsel %vm642, %v627, 0.0
        %v655 = vsel %vm642, %v629, 0.0
        %v656 = vsel %vm642, %v631, 0.0
        %v657 = vsel %vm642, %v633, 0.0
        %v658 = vsel %vm642, %v635, 0.0
        %v659 = vld [vmem:[%s4] sm:$0xff]
        %v660 = vld [vmem:[%s4 + $0x8] sm:$0xff]
        %v661 = vld [vmem:[%s4 + $0x10] sm:$0xff]
        %v662 = vld [vmem:[%s4 + $0x18] sm:$0xff]
        %v663 = vld [vmem:[%s4 + $0x20] sm:$0xff]
        %v664 = vld [vmem:[%s4 + $0x28] sm:$0xff]
        %v665 = vld [vmem:[%s4 + $0x30] sm:$0xff]
        %v666 = vld [vmem:[%s4 + $0x38] sm:$0xff]
        %v667 = vld [vmem:[%s4 + $0x40] sm:$0xff]
        %v668 = vld [vmem:[%s4 + $0x48] sm:$0xff]
        %v669 = vld [vmem:[%s4 + $0x50] sm:$0xff]
        %v670 = vld [vmem:[%s4 + $0x58] sm:$0xff]
        %v671 = vld [vmem:[%s4 + $0x60] sm:$0xff]
        %v672 = vld [vmem:[%s4 + $0x68] sm:$0xff]
        %v673 = vld [vmem:[%s4 + $0x70] sm:$0xff]
        %v674 = vld [vmem:[%s4 + $0x78] sm:$0xff]
        %v675 = vld [vmem:[%s5] sm:$0xff]
        %v676 = vld [vmem:[%s5 + $0x8] sm:$0xff]
        %v677 = vld [vmem:[%s5 + $0x10] sm:$0xff]
        %v678 = vld [vmem:[%s5 + $0x18] sm:$0xff]
        %v679 = vld [vmem:[%s5 + $0x20] sm:$0xff]
        %v680 = vld [vmem:[%s5 + $0x28] sm:$0xff]
        %v681 = vld [vmem:[%s5 + $0x30] sm:$0xff]
        %v682 = vld [vmem:[%s5 + $0x38] sm:$0xff]
        %v683 = vld [vmem:[%s5 + $0x40] sm:$0xff]
        %v684 = vld [vmem:[%s5 + $0x48] sm:$0xff]
        %v685 = vld [vmem:[%s5 + $0x50] sm:$0xff]
        %v686 = vld [vmem:[%s5 + $0x58] sm:$0xff]
        %v687 = vld [vmem:[%s5 + $0x60] sm:$0xff]
        %v688 = vld [vmem:[%s5 + $0x68] sm:$0xff]
        %v689 = vld [vmem:[%s5 + $0x70] sm:$0xff]
        %v690 = vld [vmem:[%s5 + $0x78] sm:$0xff]
        %692 = vset.pattern.permute.xlu0 0
        %693 = vperm.xlu0 %692, %v675
        %v694 = vpop.permute.xlu0 %693
        %697 = vset.pattern.permute.xlu0 0
        %698 = vperm.xlu0 %697, %v676
        %v699 = vpop.permute.xlu0 %698
        %702 = vset.pattern.permute.xlu0 0
        %703 = vperm.xlu0 %702, %v677
        %v704 = vpop.permute.xlu0 %703
        %707 = vset.pattern.permute.xlu0 0
        %708 = vperm.xlu0 %707, %v678
        %v709 = vpop.permute.xlu0 %708
        %712 = vset.pattern.permute.xlu0 0
        %713 = vperm.xlu0 %712, %v679
        %v714 = vpop.permute.xlu0 %713
        %717 = vset.pattern.permute.xlu0 0
        %718 = vperm.xlu0 %717, %v680
        %v719 = vpop.permute.xlu0 %718
        %722 = vset.pattern.permute.xlu0 0
        %723 = vperm.xlu0 %722, %v681
        %v724 = vpop.permute.xlu0 %723
        %727 = vset.pattern.permute.xlu0 0
        %728 = vperm.xlu0 %727, %v682
        %v729 = vpop.permute.xlu0 %728
        %732 = vset.pattern.permute.xlu0 0
        %733 = vperm.xlu0 %732, %v683
        %v734 = vpop.permute.xlu0 %733
        %737 = vset.pattern.permute.xlu0 0
        %738 = vperm.xlu0 %737, %v684
        %v739 = vpop.permute.xlu0 %738
        %742 = vset.pattern.permute.xlu0 0
        %743 = vperm.xlu0 %742, %v685
        %v744 = vpop.permute.xlu0 %743
        %747 = vset.pattern.permute.xlu0 0
        %748 = vperm.xlu0 %747, %v686
        %v749 = vpop.permute.xlu0 %748
        %752 = vset.pattern.permute.xlu0 0
        %753 = vperm.xlu0 %752, %v687
        %v754 = vpop.permute.xlu0 %753
        %757 = vset.pattern.permute.xlu0 0
        %758 = vperm.xlu0 %757, %v688
        %v759 = vpop.permute.xlu0 %758
        %762 = vset.pattern.permute.xlu0 0
        %763 = vperm.xlu0 %762, %v689
        %v764 = vpop.permute.xlu0 %763
        %767 = vset.pattern.permute.xlu0 0
        %768 = vperm.xlu0 %767, %v690
        %v769 = vpop.permute.xlu0 %768
        %771 = vmatprep.subr.mxu0 0.0
        %772 = vmatpush1.msra.mxu0 %v643
        %773 = vmatprep.subr.mxu0 0.0
        %774 = vmatpush1.msra.mxu0 %v644
        %775 = vmatprep.subr.mxu0 0.0
        %776 = vmatpush1.msra.mxu0 %v645
        %777 = vmatprep.subr.mxu0 0.0
        %778 = vmatpush1.msra.mxu0 %v646
        %779 = vmatprep.subr.mxu0 0.0
        %780 = vmatpush1.msra.mxu0 %v647
        %781 = vmatprep.subr.mxu0 0.0
        %782 = vmatpush1.msra.mxu0 %v648
        %783 = vmatprep.subr.mxu0 0.0
        %784 = vmatpush1.msra.mxu0 %v649
        %785 = vmatprep.subr.mxu0 0.0
        %786 = vmatpush1.msra.mxu0 %v650
        %787 = vmatprep.subr.mxu0 0.0
        %788 = vmatpush1.msra.mxu0 %v651
        %789 = vmatprep.subr.mxu0 0.0
        %790 = vmatpush1.msra.mxu0 %v652
        %791 = vmatprep.subr.mxu0 0.0
        %792 = vmatpush1.msra.mxu0 %v653
        %793 = vmatprep.subr.mxu0 0.0
        %794 = vmatpush1.msra.mxu0 %v654
        %795 = vmatprep.subr.mxu0 0.0
        %796 = vmatpush1.msra.mxu0 %v655
        %797 = vmatprep.subr.mxu0 0.0
        %798 = vmatpush1.msra.mxu0 %v656
        %799 = vmatprep.subr.mxu0 0.0
        %800 = vmatpush1.msra.mxu0 %v657
        %801 = vmatprep.subr.mxu0 0.0
        %802 = vmatpush1.msra.mxu0 %v658
        %803 = vmatprep.subr.mxu0 0.0
        %804 = vmatpush1.msra.mxu0 0.0
        %805 = vmatprep.subr.mxu0 0.0
        %806 = vmatpush1.msra.mxu0 0.0
        %807 = vmatprep.subr.mxu0 0.0
        %808 = vmatpush1.msra.mxu0 0.0
        %809 = vmatprep.subr.mxu0 0.0
        %810 = vmatpush1.msra.mxu0 0.0
        %811 = vmatprep.subr.mxu0 0.0
        %812 = vmatpush1.msra.mxu0 0.0
        %813 = vmatprep.subr.mxu0 0.0
        %814 = vmatpush1.msra.mxu0 0.0
        %815 = vmatprep.subr.mxu0 0.0
        %816 = vmatpush1.msra.mxu0 0.0
        %817 = vmatprep.subr.mxu0 0.0
        %818 = vmatpush1.msra.mxu0 0.0
        %819 = vmatprep.subr.mxu0 0.0
        %820 = vmatpush1.msra.mxu0 0.0
        %821 = vmatprep.subr.mxu0 0.0
        %822 = vmatpush1.msra.mxu0 0.0
        %823 = vmatprep.subr.mxu0 0.0
        %824 = vmatpush1.msra.mxu0 0.0
        %825 = vmatprep.subr.mxu0 0.0
        %826 = vmatpush1.msra.mxu0 0.0
        %827 = vmatprep.subr.mxu0 0.0
        %828 = vmatpush1.msra.mxu0 0.0
        %829 = vmatprep.subr.mxu0 0.0
        %830 = vmatpush1.msra.mxu0 0.0
        %831 = vmatprep.subr.mxu0 0.0
        %832 = vmatpush1.msra.mxu0 0.0
        %833 = vmatprep.subr.mxu0 0.0
        %834 = vmatpush1.msra.mxu0 0.0
        %835 = vmatprep.mubr.f32.mxu0 0.0
        %836 = vmatmul.mubr.f32.gmra.mrb[0].mxu0 %v659
        %v837 = vpop.f32.mrb[0].mxu0
        %v838 = vadd.f32 %v694, %v837
        %v839 = vpop.f32.mrb[0].mxu0
        %840 = vmatprep.mubr.f32.mxu0 0.0
        %841 = vmatmul.mubr.f32.gmra.mrb[0].mxu0 %v660
        %v842 = vpop.f32.mrb[0].mxu0
        %v843 = vadd.f32 %v699, %v842
        %v844 = vpop.f32.mrb[0].mxu0
        %845 = vmatprep.mubr.f32.mxu0 0.0
        %846 = vmatmul.mubr.f32.gmra.mrb[0].mxu0 %v661
        %v847 = vpop.f32.mrb[0].mxu0
        %v848 = vadd.f32 %v704, %v847
        %v849 = vpop.f32.mrb[0].mxu0
        %850 = vmatprep.mubr.f32.mxu0 0.0
        %851 = vmatmul.mubr.f32.gmra.mrb[0].mxu0 %v662
        %v852 = vpop.f32.mrb[0].mxu0
        %v853 = vadd.f32 %v709, %v852
        %v854 = vpop.f32.mrb[0].mxu0
        %855 = vmatprep.mubr.f32.mxu0 0.0
        %856 = vmatmul.mubr.f32.gmra.mrb[0].mxu0 %v663
        %v857 = vpop.f32.mrb[0].mxu0
        %v858 = vadd.f32 %v714, %v857
        %v859 = vpop.f32.mrb[0].mxu0
        %860 = vmatprep.mubr.f32.mxu0 0.0
        %861 = vmatmul.mubr.f32.gmra.mrb[0].mxu0 %v664
        %v862 = vpop.f32.mrb[0].mxu0
        %v863 = vadd.f32 %v719, %v862
        %v864 = vpop.f32.mrb[0].mxu0
        %865 = vmatprep.mubr.f32.mxu0 0.0
        %866 = vmatmul.mubr.f32.gmra.mrb[0].mxu0 %v665
        %v867 = vpop.f32.mrb[0].mxu0
        %v868 = vadd.f32 %v724, %v867
        %v869 = vpop.f32.mrb[0].mxu0
        %870 = vmatprep.mubr.f32.mxu0 0.0
        %871 = vmatmul.mubr.f32.gmra.mrb[0].mxu0 %v666
        %v872 = vpop.f32.mrb[0].mxu0
        %v873 = vadd.f32 %v729, %v872
        %v874 = vpop.f32.mrb[0].mxu0
        %875 = vmatprep.mubr.f32.mxu0 0.0
        %876 = vmatmul.mubr.f32.gmra.mrb[0].mxu0 %v667
        %v877 = vpop.f32.mrb[0].mxu0
        %v878 = vadd.f32 %v734, %v877
        %v879 = vpop.f32.mrb[0].mxu0
        %880 = vmatprep.mubr.f32.mxu0 0.0
        %881 = vmatmul.mubr.f32.gmra.mrb[0].mxu0 %v668
        %v882 = vpop.f32.mrb[0].mxu0
        %v883 = vadd.f32 %v739, %v882
        %v884 = vpop.f32.mrb[0].mxu0
        %885 = vmatprep.mubr.f32.mxu0 0.0
        %886 = vmatmul.mubr.f32.gmra.mrb[0].mxu0 %v669
        %v887 = vpop.f32.mrb[0].mxu0
        %v888 = vadd.f32 %v744, %v887
        %v889 = vpop.f32.mrb[0].mxu0
        %890 = vmatprep.mubr.f32.mxu0 0.0
        %891 = vmatmul.mubr.f32.gmra.mrb[0].mxu0 %v670
        %v892 = vpop.f32.mrb[0].mxu0
        %v893 = vadd.f32 %v749, %v892
        %v894 = vpop.f32.mrb[0].mxu0
        %895 = vmatprep.mubr.f32.mxu0 0.0
        %896 = vmatmul.mubr.f32.gmra.mrb[0].mxu0 %v671
        %v897 = vpop.f32.mrb[0].mxu0
        %v898 = vadd.f32 %v754, %v897
        %v899 = vpop.f32.mrb[0].mxu0
        %900 = vmatprep.mubr.f32.mxu0 0.0
        %901 = vmatmul.mubr.f32.gmra.mrb[0].mxu0 %v672
        %v902 = vpop.f32.mrb[0].mxu0
        %v903 = vadd.f32 %v759, %v902
        %v904 = vpop.f32.mrb[0].mxu0
        %905 = vmatprep.mubr.f32.mxu0 0.0
        %906 = vmatmul.mubr.f32.gmra.mrb[0].mxu0 %v673
        %v907 = vpop.f32.mrb[0].mxu0
        %v908 = vadd.f32 %v764, %v907
        %v909 = vpop.f32.mrb[0].mxu0
        %910 = vmatprep.mubr.f32.mxu0 0.0
        %911 = vmatmul.mubr.f32.gmra.mrb[0].mxu0 %v674
        %v912 = vpop.f32.mrb[0].mxu0
        %v913 = vadd.f32 %v769, %v912
        %v914 = vpop.f32.mrb[0].mxu0
        %915 = vdwg.mxu0
        %v916 = vxor.u32 %v838, 2147483648
        %v917 = vxor.u32 %v843, 2147483648
        %v918 = vxor.u32 %v848, 2147483648
        %v919 = vxor.u32 %v853, 2147483648
        %v920 = vxor.u32 %v858, 2147483648
        %v921 = vxor.u32 %v863, 2147483648
        %v922 = vxor.u32 %v868, 2147483648
        %v923 = vxor.u32 %v873, 2147483648
        %v924 = vxor.u32 %v878, 2147483648
        %v925 = vxor.u32 %v883, 2147483648
        %v926 = vxor.u32 %v888, 2147483648
        %v927 = vxor.u32 %v893, 2147483648
        %v928 = vxor.u32 %v898, 2147483648
        %v929 = vxor.u32 %v903, 2147483648
        %v930 = vxor.u32 %v908, 2147483648
        %v931 = vxor.u32 %v913, 2147483648
        %v932 = vmul.f32 %v916, 1.442695
        %v933 = vpow.pop %v932
        %v934 = vmul.f32 %v917, 1.442695
        %v935 = vpow.pop %v934
        %v936 = vmul.f32 %v918, 1.442695
        %v937 = vpow.pop %v936
        %v938 = vmul.f32 %v919, 1.442695
        %v939 = vpow.pop %v938
        %v940 = vmul.f32 %v920, 1.442695
        %v941 = vpow.pop %v940
        %v942 = vmul.f32 %v921, 1.442695
        %v943 = vpow.pop %v942
        %v944 = vmul.f32 %v922, 1.442695
        %v945 = vpow.pop %v944
        %v946 = vmul.f32 %v923, 1.442695
        %v947 = vpow.pop %v946
        %v948 = vmul.f32 %v924, 1.442695
        %v949 = vpow.pop %v948
        %v950 = vmul.f32 %v925, 1.442695
        %v951 = vpow.pop %v950
        %v952 = vmul.f32 %v926, 1.442695
        %v953 = vpow.pop %v952
        %v954 = vmul.f32 %v927, 1.442695
        %v955 = vpow.pop %v954
        %v956 = vmul.f32 %v928, 1.442695
        %v957 = vpow.pop %v956
        %v958 = vmul.f32 %v929, 1.442695
        %v959 = vpow.pop %v958
        %v960 = vmul.f32 %v930, 1.442695
        %v961 = vpow.pop %v960
        %v962 = vmul.f32 %v931, 1.442695
        %v963 = vpow.pop %v962
        %v964 = vadd.f32 %v933, 1.0
        %v965 = vadd.f32 %v935, 1.0
        %v966 = vadd.f32 %v937, 1.0
        %v967 = vadd.f32 %v939, 1.0
        %v968 = vadd.f32 %v941, 1.0
        %v969 = vadd.f32 %v943, 1.0
        %v970 = vadd.f32 %v945, 1.0
        %v971 = vadd.f32 %v947, 1.0
        %v972 = vadd.f32 %v949, 1.0
        %v973 = vadd.f32 %v951, 1.0
        %v974 = vadd.f32 %v953, 1.0
        %v975 = vadd.f32 %v955, 1.0
        %v976 = vadd.f32 %v957, 1.0
        %v977 = vadd.f32 %v959, 1.0
        %v978 = vadd.f32 %v961, 1.0
        %v979 = vadd.f32 %v963, 1.0
        %v980 = vrcp.pop %v964
        %v981 = vmul.f32 1.0, %v980
        %v982 = vrcp.pop %v965
        %v983 = vmul.f32 1.0, %v982
        %v984 = vrcp.pop %v966
        %v985 = vmul.f32 1.0, %v984
        %v986 = vrcp.pop %v967
        %v987 = vmul.f32 1.0, %v986
        %v988 = vrcp.pop %v968
        %v989 = vmul.f32 1.0, %v988
        %v990 = vrcp.pop %v969
        %v991 = vmul.f32 1.0, %v990
        %v992 = vrcp.pop %v970
        %v993 = vmul.f32 1.0, %v992
        %v994 = vrcp.pop %v971
        %v995 = vmul.f32 1.0, %v994
        %v996 = vrcp.pop %v972
        %v997 = vmul.f32 1.0, %v996
        %v998 = vrcp.pop %v973
        %v999 = vmul.f32 1.0, %v998
        %v1000 = vrcp.pop %v974
        %v1001 = vmul.f32 1.0, %v1000
        %v1002 = vrcp.pop %v975
        %v1003 = vmul.f32 1.0, %v1002
        %v1004 = vrcp.pop %v976
        %v1005 = vmul.f32 1.0, %v1004
        %v1006 = vrcp.pop %v977
        %v1007 = vmul.f32 1.0, %v1006
        %v1008 = vrcp.pop %v978
        %v1009 = vmul.f32 1.0, %v1008
        %v1010 = vrcp.pop %v979
        %v1011 = vmul.f32 1.0, %v1010
        %vm1012 = vcmp.ge.f32.partialorder %v309, 1.0
        %v1013 = vsel %vm1012, 1, 0
        %v1014 = vlaneseq
        %v1015 = vshrl.u32 %v1014, 7
        %v1016 = vsub.s32 0, %v1015
        %v1017 = vrot.slane %v1013, %v1016
        %vm1018 = vcmp.eq.s32.totalorder %v1017, 1
        %v1019 = vsel %vm1018, %v981, 0.0
        %v1020 = vsel %vm1018, %v983, 0.0
        %v1021 = vsel %vm1018, %v985, 0.0
        %v1022 = vsel %vm1018, %v987, 0.0
        %v1023 = vsel %vm1018, %v989, 0.0
        %v1024 = vsel %vm1018, %v991, 0.0
        %v1025 = vsel %vm1018, %v993, 0.0
        %v1026 = vsel %vm1018, %v995, 0.0
        %v1027 = vsel %vm1018, %v997, 0.0
        %v1028 = vsel %vm1018, %v999, 0.0
        %v1029 = vsel %vm1018, %v1001, 0.0
        %v1030 = vsel %vm1018, %v1003, 0.0
        %v1031 = vsel %vm1018, %v1005, 0.0
        %v1032 = vsel %vm1018, %v1007, 0.0
        %v1033 = vsel %vm1018, %v1009, 0.0
        %v1034 = vsel %vm1018, %v1011, 0.0
        %v1035 = vld [vmem:[%s6] sm:$0xff]
        %v1036 = vld [vmem:[%s6 + $0x8] sm:$0xff]
        %v1037 = vld [vmem:[%s6 + $0x10] sm:$0xff]
        %v1038 = vld [vmem:[%s6 + $0x18] sm:$0xff]
        %v1039 = vld [vmem:[%s6 + $0x20] sm:$0xff]
        %v1040 = vld [vmem:[%s6 + $0x28] sm:$0xff]
        %v1041 = vld [vmem:[%s6 + $0x30] sm:$0xff]
        %v1042 = vld [vmem:[%s6 + $0x38] sm:$0xff]
        %v1043 = vld [vmem:[%s6 + $0x40] sm:$0xff]
        %v1044 = vld [vmem:[%s6 + $0x48] sm:$0xff]
        %v1045 = vld [vmem:[%s6 + $0x50] sm:$0xff]
        %v1046 = vld [vmem:[%s6 + $0x58] sm:$0xff]
        %v1047 = vld [vmem:[%s6 + $0x60] sm:$0xff]
        %v1048 = vld [vmem:[%s6 + $0x68] sm:$0xff]
        %v1049 = vld [vmem:[%s6 + $0x70] sm:$0xff]
        %v1050 = vld [vmem:[%s6 + $0x78] sm:$0xff]
        %v1051 = vld [vmem:[%s7] sm:$0xff]
        %v1052 = vld [vmem:[%s7 + $0x8] sm:$0xff]
        %v1053 = vld [vmem:[%s7 + $0x10] sm:$0xff]
        %v1054 = vld [vmem:[%s7 + $0x18] sm:$0xff]
        %v1055 = vld [vmem:[%s7 + $0x20] sm:$0xff]
        %v1056 = vld [vmem:[%s7 + $0x28] sm:$0xff]
        %v1057 = vld [vmem:[%s7 + $0x30] sm:$0xff]
        %v1058 = vld [vmem:[%s7 + $0x38] sm:$0xff]
        %v1059 = vld [vmem:[%s7 + $0x40] sm:$0xff]
        %v1060 = vld [vmem:[%s7 + $0x48] sm:$0xff]
        %v1061 = vld [vmem:[%s7 + $0x50] sm:$0xff]
        %v1062 = vld [vmem:[%s7 + $0x58] sm:$0xff]
        %v1063 = vld [vmem:[%s7 + $0x60] sm:$0xff]
        %v1064 = vld [vmem:[%s7 + $0x68] sm:$0xff]
        %v1065 = vld [vmem:[%s7 + $0x70] sm:$0xff]
        %v1066 = vld [vmem:[%s7 + $0x78] sm:$0xff]
        %1068 = vset.pattern.permute.xlu0 0
        %1069 = vperm.xlu0 %1068, %v1051
        %v1070 = vpop.permute.xlu0 %1069
        %1073 = vset.pattern.permute.xlu0 0
        %1074 = vperm.xlu0 %1073, %v1052
        %v1075 = vpop.permute.xlu0 %1074
        %1078 = vset.pattern.permute.xlu0 0
        %1079 = vperm.xlu0 %1078, %v1053
        %v1080 = vpop.permute.xlu0 %1079
        %1083 = vset.pattern.permute.xlu0 0
        %1084 = vperm.xlu0 %1083, %v1054
        %v1085 = vpop.permute.xlu0 %1084
        %1088 = vset.pattern.permute.xlu0 0
        %1089 = vperm.xlu0 %1088, %v1055
        %v1090 = vpop.permute.xlu0 %1089
        %1093 = vset.pattern.permute.xlu0 0
        %1094 = vperm.xlu0 %1093, %v1056
        %v1095 = vpop.permute.xlu0 %1094
        %1098 = vset.pattern.permute.xlu0 0
        %1099 = vperm.xlu0 %1098, %v1057
        %v1100 = vpop.permute.xlu0 %1099
        %1103 = vset.pattern.permute.xlu0 0
        %1104 = vperm.xlu0 %1103, %v1058
        %v1105 = vpop.permute.xlu0 %1104
        %1108 = vset.pattern.permute.xlu0 0
        %1109 = vperm.xlu0 %1108, %v1059
        %v1110 = vpop.permute.xlu0 %1109
        %1113 = vset.pattern.permute.xlu0 0
        %1114 = vperm.xlu0 %1113, %v1060
        %v1115 = vpop.permute.xlu0 %1114
        %1118 = vset.pattern.permute.xlu0 0
        %1119 = vperm.xlu0 %1118, %v1061
        %v1120 = vpop.permute.xlu0 %1119
        %1123 = vset.pattern.permute.xlu0 0
        %1124 = vperm.xlu0 %1123, %v1062
        %v1125 = vpop.permute.xlu0 %1124
        %1128 = vset.pattern.permute.xlu0 0
        %1129 = vperm.xlu0 %1128, %v1063
        %v1130 = vpop.permute.xlu0 %1129
        %1133 = vset.pattern.permute.xlu0 0
        %1134 = vperm.xlu0 %1133, %v1064
        %v1135 = vpop.permute.xlu0 %1134
        %1138 = vset.pattern.permute.xlu0 0
        %1139 = vperm.xlu0 %1138, %v1065
        %v1140 = vpop.permute.xlu0 %1139
        %1143 = vset.pattern.permute.xlu0 0
        %1144 = vperm.xlu0 %1143, %v1066
        %v1145 = vpop.permute.xlu0 %1144
        %1147 = vmatprep.subr.mxu0 0.0
        %1148 = vmatpush1.msra.mxu0 %v1019
        %1149 = vmatprep.subr.mxu0 0.0
        %1150 = vmatpush1.msra.mxu0 %v1020
        %1151 = vmatprep.subr.mxu0 0.0
        %1152 = vmatpush1.msra.mxu0 %v1021
        %1153 = vmatprep.subr.mxu0 0.0
        %1154 = vmatpush1.msra.mxu0 %v1022
        %1155 = vmatprep.subr.mxu0 0.0
        %1156 = vmatpush1.msra.mxu0 %v1023
        %1157 = vmatprep.subr.mxu0 0.0
        %1158 = vmatpush1.msra.mxu0 %v1024
        %1159 = vmatprep.subr.mxu0 0.0
        %1160 = vmatpush1.msra.mxu0 %v1025
        %1161 = vmatprep.subr.mxu0 0.0
        %1162 = vmatpush1.msra.mxu0 %v1026
        %1163 = vmatprep.subr.mxu0 0.0
        %1164 = vmatpush1.msra.mxu0 %v1027
        %1165 = vmatprep.subr.mxu0 0.0
        %1166 = vmatpush1.msra.mxu0 %v1028
        %1167 = vmatprep.subr.mxu0 0.0
        %1168 = vmatpush1.msra.mxu0 %v1029
        %1169 = vmatprep.subr.mxu0 0.0
        %1170 = vmatpush1.msra.mxu0 %v1030
        %1171 = vmatprep.subr.mxu0 0.0
        %1172 = vmatpush1.msra.mxu0 %v1031
        %1173 = vmatprep.subr.mxu0 0.0
        %1174 = vmatpush1.msra.mxu0 %v1032
        %1175 = vmatprep.subr.mxu0 0.0
        %1176 = vmatpush1.msra.mxu0 %v1033
        %1177 = vmatprep.subr.mxu0 0.0
        %1178 = vmatpush1.msra.mxu0 %v1034
        %1179 = vmatprep.subr.mxu0 0.0
        %1180 = vmatpush1.msra.mxu0 0.0
        %1181 = vmatprep.subr.mxu0 0.0
        %1182 = vmatpush1.msra.mxu0 0.0
        %1183 = vmatprep.subr.mxu0 0.0
        %1184 = vmatpush1.msra.mxu0 0.0
        %1185 = vmatprep.subr.mxu0 0.0
        %1186 = vmatpush1.msra.mxu0 0.0
        %1187 = vmatprep.subr.mxu0 0.0
        %1188 = vmatpush1.msra.mxu0 0.0
        %1189 = vmatprep.subr.mxu0 0.0
        %1190 = vmatpush1.msra.mxu0 0.0
        %1191 = vmatprep.subr.mxu0 0.0
        %1192 = vmatpush1.msra.mxu0 0.0
        %1193 = vmatprep.subr.mxu0 0.0
        %1194 = vmatpush1.msra.mxu0 0.0
        %1195 = vmatprep.subr.mxu0 0.0
        %1196 = vmatpush1.msra.mxu0 0.0
        %1197 = vmatprep.subr.mxu0 0.0
        %1198 = vmatpush1.msra.mxu0 0.0
        %1199 = vmatprep.subr.mxu0 0.0
        %1200 = vmatpush1.msra.mxu0 0.0
        %1201 = vmatprep.subr.mxu0 0.0
        %1202 = vmatpush1.msra.mxu0 0.0
        %1203 = vmatprep.subr.mxu0 0.0
        %1204 = vmatpush1.msra.mxu0 0.0
        %1205 = vmatprep.subr.mxu0 0.0
        %1206 = vmatpush1.msra.mxu0 0.0
        %1207 = vmatprep.subr.mxu0 0.0
        %1208 = vmatpush1.msra.mxu0 0.0
        %1209 = vmatprep.subr.mxu0 0.0
        %1210 = vmatpush1.msra.mxu0 0.0
        %1211 = vmatprep.mubr.f32.mxu0 0.0
        %1212 = vmatmul.mubr.f32.gmra.mrb[0].mxu0 %v1035
        %v1213 = vpop.f32.mrb[0].mxu0
        %v1214 = vadd.f32 %v1070, %v1213
        %v1215 = vpop.f32.mrb[0].mxu0
        %1216 = vmatprep.mubr.f32.mxu0 0.0
        %1217 = vmatmul.mubr.f32.gmra.mrb[0].mxu0 %v1036
        %v1218 = vpop.f32.mrb[0].mxu0
        %v1219 = vadd.f32 %v1075, %v1218
        %v1220 = vpop.f32.mrb[0].mxu0
        %1221 = vmatprep.mubr.f32.mxu0 0.0
        %1222 = vmatmul.mubr.f32.gmra.mrb[0].mxu0 %v1037
        %v1223 = vpop.f32.mrb[0].mxu0
        %v1224 = vadd.f32 %v1080, %v1223
        %v1225 = vpop.f32.mrb[0].mxu0
        %1226 = vmatprep.mubr.f32.mxu0 0.0
        %1227 = vmatmul.mubr.f32.gmra.mrb[0].mxu0 %v1038
        %v1228 = vpop.f32.mrb[0].mxu0
        %v1229 = vadd.f32 %v1085, %v1228
        %v1230 = vpop.f32.mrb[0].mxu0
        %1231 = vmatprep.mubr.f32.mxu0 0.0
        %1232 = vmatmul.mubr.f32.gmra.mrb[0].mxu0 %v1039
        %v1233 = vpop.f32.mrb[0].mxu0
        %v1234 = vadd.f32 %v1090, %v1233
        %v1235 = vpop.f32.mrb[0].mxu0
        %1236 = vmatprep.mubr.f32.mxu0 0.0
        %1237 = vmatmul.mubr.f32.gmra.mrb[0].mxu0 %v1040
        %v1238 = vpop.f32.mrb[0].mxu0
        %v1239 = vadd.f32 %v1095, %v1238
        %v1240 = vpop.f32.mrb[0].mxu0
        %1241 = vmatprep.mubr.f32.mxu0 0.0
        %1242 = vmatmul.mubr.f32.gmra.mrb[0].mxu0 %v1041
        %v1243 = vpop.f32.mrb[0].mxu0
        %v1244 = vadd.f32 %v1100, %v1243
        %v1245 = vpop.f32.mrb[0].mxu0
        %1246 = vmatprep.mubr.f32.mxu0 0.0
        %1247 = vmatmul.mubr.f32.gmra.mrb[0].mxu0 %v1042
        %v1248 = vpop.f32.mrb[0].mxu0
        %v1249 = vadd.f32 %v1105, %v1248
        %v1250 = vpop.f32.mrb[0].mxu0
        %1251 = vmatprep.mubr.f32.mxu0 0.0
        %1252 = vmatmul.mubr.f32.gmra.mrb[0].mxu0 %v1043
        %v1253 = vpop.f32.mrb[0].mxu0
        %v1254 = vadd.f32 %v1110, %v1253
        %v1255 = vpop.f32.mrb[0].mxu0
        %1256 = vmatprep.mubr.f32.mxu0 0.0
        %1257 = vmatmul.mubr.f32.gmra.mrb[0].mxu0 %v1044
        %v1258 = vpop.f32.mrb[0].mxu0
        %v1259 = vadd.f32 %v1115, %v1258
        %v1260 = vpop.f32.mrb[0].mxu0
        %1261 = vmatprep.mubr.f32.mxu0 0.0
        %1262 = vmatmul.mubr.f32.gmra.mrb[0].mxu0 %v1045
        %v1263 = vpop.f32.mrb[0].mxu0
        %v1264 = vadd.f32 %v1120, %v1263
        %v1265 = vpop.f32.mrb[0].mxu0
        %1266 = vmatprep.mubr.f32.mxu0 0.0
        %1267 = vmatmul.mubr.f32.gmra.mrb[0].mxu0 %v1046
        %v1268 = vpop.f32.mrb[0].mxu0
        %v1269 = vadd.f32 %v1125, %v1268
        %v1270 = vpop.f32.mrb[0].mxu0
        %1271 = vmatprep.mubr.f32.mxu0 0.0
        %1272 = vmatmul.mubr.f32.gmra.mrb[0].mxu0 %v1047
        %v1273 = vpop.f32.mrb[0].mxu0
        %v1274 = vadd.f32 %v1130, %v1273
        %v1275 = vpop.f32.mrb[0].mxu0
        %1276 = vmatprep.mubr.f32.mxu0 0.0
        %1277 = vmatmul.mubr.f32.gmra.mrb[0].mxu0 %v1048
        %v1278 = vpop.f32.mrb[0].mxu0
        %v1279 = vadd.f32 %v1135, %v1278
        %v1280 = vpop.f32.mrb[0].mxu0
        %1281 = vmatprep.mubr.f32.mxu0 0.0
        %1282 = vmatmul.mubr.f32.gmra.mrb[0].mxu0 %v1049
        %v1283 = vpop.f32.mrb[0].mxu0
        %v1284 = vadd.f32 %v1140, %v1283
        %v1285 = vpop.f32.mrb[0].mxu0
        %1286 = vmatprep.mubr.f32.mxu0 0.0
        %1287 = vmatmul.mubr.f32.gmra.mrb[0].mxu0 %v1050
        %v1288 = vpop.f32.mrb[0].mxu0
        %v1289 = vadd.f32 %v1145, %v1288
        %v1290 = vpop.f32.mrb[0].mxu0
        %1291 = vdwg.mxu0
        %v1292 = vxor.u32 %v1214, 2147483648
        %v1293 = vxor.u32 %v1219, 2147483648
        %v1294 = vxor.u32 %v1224, 2147483648
        %v1295 = vxor.u32 %v1229, 2147483648
        %v1296 = vxor.u32 %v1234, 2147483648
        %v1297 = vxor.u32 %v1239, 2147483648
        %v1298 = vxor.u32 %v1244, 2147483648
        %v1299 = vxor.u32 %v1249, 2147483648
        %v1300 = vxor.u32 %v1254, 2147483648
        %v1301 = vxor.u32 %v1259, 2147483648
        %v1302 = vxor.u32 %v1264, 2147483648
        %v1303 = vxor.u32 %v1269, 2147483648
        %v1304 = vxor.u32 %v1274, 2147483648
        %v1305 = vxor.u32 %v1279, 2147483648
        %v1306 = vxor.u32 %v1284, 2147483648
        %v1307 = vxor.u32 %v1289, 2147483648
        %v1308 = vmul.f32 %v1292, 1.442695
        %v1309 = vpow.pop %v1308
        %v1310 = vmul.f32 %v1293, 1.442695
        %v1311 = vpow.pop %v1310
        %v1312 = vmul.f32 %v1294, 1.442695
        %v1313 = vpow.pop %v1312
        %v1314 = vmul.f32 %v1295, 1.442695
        %v1315 = vpow.pop %v1314
        %v1316 = vmul.f32 %v1296, 1.442695
        %v1317 = vpow.pop %v1316
        %v1318 = vmul.f32 %v1297, 1.442695
        %v1319 = vpow.pop %v1318
        %v1320 = vmul.f32 %v1298, 1.442695
        %v1321 = vpow.pop %v1320
        %v1322 = vmul.f32 %v1299, 1.442695
        %v1323 = vpow.pop %v1322
        %v1324 = vmul.f32 %v1300, 1.442695
        %v1325 = vpow.pop %v1324
        %v1326 = vmul.f32 %v1301, 1.442695
        %v1327 = vpow.pop %v1326
        %v1328 = vmul.f32 %v1302, 1.442695
        %v1329 = vpow.pop %v1328
        %v1330 = vmul.f32 %v1303, 1.442695
        %v1331 = vpow.pop %v1330
        %v1332 = vmul.f32 %v1304, 1.442695
        %v1333 = vpow.pop %v1332
        %v1334 = vmul.f32 %v1305, 1.442695
        %v1335 = vpow.pop %v1334
        %v1336 = vmul.f32 %v1306, 1.442695
        %v1337 = vpow.pop %v1336
        %v1338 = vmul.f32 %v1307, 1.442695
        %v1339 = vpow.pop %v1338
        %v1340 = vadd.f32 %v1309, 1.0
        %v1341 = vadd.f32 %v1311, 1.0
        %v1342 = vadd.f32 %v1313, 1.0
        %v1343 = vadd.f32 %v1315, 1.0
        %v1344 = vadd.f32 %v1317, 1.0
        %v1345 = vadd.f32 %v1319, 1.0
        %v1346 = vadd.f32 %v1321, 1.0
        %v1347 = vadd.f32 %v1323, 1.0
        %v1348 = vadd.f32 %v1325, 1.0
        %v1349 = vadd.f32 %v1327, 1.0
        %v1350 = vadd.f32 %v1329, 1.0
        %v1351 = vadd.f32 %v1331, 1.0
        %v1352 = vadd.f32 %v1333, 1.0
        %v1353 = vadd.f32 %v1335, 1.0
        %v1354 = vadd.f32 %v1337, 1.0
        %v1355 = vadd.f32 %v1339, 1.0
        %v1356 = vrcp.pop %v1340
        %v1357 = vmul.f32 1.0, %v1356
        %v1358 = vrcp.pop %v1341
        %v1359 = vmul.f32 1.0, %v1358
        %v1360 = vrcp.pop %v1342
        %v1361 = vmul.f32 1.0, %v1360
        %v1362 = vrcp.pop %v1343
        %v1363 = vmul.f32 1.0, %v1362
        %v1364 = vrcp.pop %v1344
        %v1365 = vmul.f32 1.0, %v1364
        %v1366 = vrcp.pop %v1345
        %v1367 = vmul.f32 1.0, %v1366
        %v1368 = vrcp.pop %v1346
        %v1369 = vmul.f32 1.0, %v1368
        %v1370 = vrcp.pop %v1347
        %v1371 = vmul.f32 1.0, %v1370
        %v1372 = vrcp.pop %v1348
        %v1373 = vmul.f32 1.0, %v1372
        %v1374 = vrcp.pop %v1349
        %v1375 = vmul.f32 1.0, %v1374
        %v1376 = vrcp.pop %v1350
        %v1377 = vmul.f32 1.0, %v1376
        %v1378 = vrcp.pop %v1351
        %v1379 = vmul.f32 1.0, %v1378
        %v1380 = vrcp.pop %v1352
        %v1381 = vmul.f32 1.0, %v1380
        %v1382 = vrcp.pop %v1353
        %v1383 = vmul.f32 1.0, %v1382
        %v1384 = vrcp.pop %v1354
        %v1385 = vmul.f32 1.0, %v1384
        %v1386 = vrcp.pop %v1355
        %v1387 = vmul.f32 1.0, %v1386
        %1388 = vst [vmem:[%s301] sm:$0xff] %v1357
        %1389 = vst [vmem:[%s301 + $0x8] sm:$0xff] %v1359
        %1390 = vst [vmem:[%s301 + $0x10] sm:$0xff] %v1361
        %1391 = vst [vmem:[%s301 + $0x18] sm:$0xff] %v1363
        %1392 = vst [vmem:[%s301 + $0x20] sm:$0xff] %v1365
        %1393 = vst [vmem:[%s301 + $0x28] sm:$0xff] %v1367
        %1394 = vst [vmem:[%s301 + $0x30] sm:$0xff] %v1369
        %1395 = vst [vmem:[%s301 + $0x38] sm:$0xff] %v1371
        %1396 = vst [vmem:[%s301 + $0x40] sm:$0xff] %v1373
        %1397 = vst [vmem:[%s301 + $0x48] sm:$0xff] %v1375
        %1398 = vst [vmem:[%s301 + $0x50] sm:$0xff] %v1377
        %1399 = vst [vmem:[%s301 + $0x58] sm:$0xff] %v1379
        %1400 = vst [vmem:[%s301 + $0x60] sm:$0xff] %v1381
        %1401 = vst [vmem:[%s301 + $0x68] sm:$0xff] %v1383
        %1402 = vst [vmem:[%s301 + $0x70] sm:$0xff] %v1385
        %1403 = vst [vmem:[%s301 + $0x78] sm:$0xff] %v1387
        %s1404 = sand.u32 %s205, 1
        %s1405 = sand.u32 %s205, 1
        %s1406 = smul.addr %s1405, 128
        %s1407 = scalar_lea.vmem [#allocation2], %s1406
        // Predicated region
        $region53: #{model_forward.1} parent=51 // pred_check
          %p1408 = pneg %p215
        $region54: #{model_forward.1} parent=51 // pred_check_branch
          %1410 = sbr.rel (%p1408) target = $region56
        $region55: #{model_forward.1} parent=51 // pred_region
          %s1411 = smul.addr %s19, 8
          %s1412 = scalar_lea.vmem %s8, %s1411
          // Predicated region
          $region57: #{model_forward.1} parent=55 // pred_check
            _
          $region58: #{model_forward.1} parent=55 // pred_check_branch
            %1414 = sbr.rel (0) target = $region60
          $region59: #{model_forward.1} parent=55 // pred_region
            // Predicated region
            $region61: #{model_forward.1} parent=59 // pred_check
              _
            $region62: #{model_forward.1} parent=59 // pred_check_branch
              %1416 = sbr.rel (0) target = $region64
            $region63: #{model_forward.1} parent=59 // pred_region
              // Predicated region
              $region76: #{model_forward.1} parent=63 // pred_check
                _
              $region77: #{model_forward.1} parent=63 // pred_check_branch
                %1461 = sbr.rel (0) target = $region79
              $region78: #{model_forward.1} parent=63 // pred_region
                loop: start=0, step=1, limit=1
                $region80: #{model_forward.1} parent=78 // loop_pre_header
                  _
                $region81: #{model_forward.1} parent=78 // loop_header
                  %s1463 = sphi 0, %s1467
                  %p1464 = scmp.ge.s32.totalorder %s1463, 1
                  %s1468 = sphi %s1407, %s1407
                  %s1469 = sphi %s1412, %s1412
                $region82: #{model_forward.1} parent=78 // loop_header_branch
                  %1466 = sbr.rel (%p1464) target = $region86
                $region83: #{model_forward.1} parent=78 // loop_body
                  %v1470 = vld [vmem:[%s1468] sm:$0xff]
                  %1471 = vst [vmem:[%s1469] sm:$0xff] %v1470
                  %v1472 = vld [vmem:[%s1468 + $0x8] sm:$0xff]
                  %1473 = vst [vmem:[%s1469 + $0x20] sm:$0xff] %v1472
                  %v1474 = vld [vmem:[%s1468 + $0x10] sm:$0xff]
                  %1475 = vst [vmem:[%s1469 + $0x40] sm:$0xff] %v1474
                  %v1476 = vld [vmem:[%s1468 + $0x18] sm:$0xff]
                  %1477 = vst [vmem:[%s1469 + $0x60] sm:$0xff] %v1476
                  %v1478 = vld [vmem:[%s1468 + $0x20] sm:$0xff]
                  %1479 = vst [vmem:[%s1469 + $0x80] sm:$0xff] %v1478
                  %v1480 = vld [vmem:[%s1468 + $0x28] sm:$0xff]
                  %1481 = vst [vmem:[%s1469 + $0xa0] sm:$0xff] %v1480
                  %v1482 = vld [vmem:[%s1468 + $0x30] sm:$0xff]
                  %1483 = vst [vmem:[%s1469 + $0xc0] sm:$0xff] %v1482
                  %v1484 = vld [vmem:[%s1468 + $0x38] sm:$0xff]
                  %1485 = vst [vmem:[%s1469 + $0xe0] sm:$0xff] %v1484
                  %v1486 = vld [vmem:[%s1468 + $0x40] sm:$0xff]
                  %1487 = vst [vmem:[%s1469 + $0x100] sm:$0xff] %v1486
                  %v1488 = vld [vmem:[%s1468 + $0x48] sm:$0xff]
                  %1489 = vst [vmem:[%s1469 + $0x120] sm:$0xff] %v1488
                  %v1490 = vld [vmem:[%s1468 + $0x50] sm:$0xff]
                  %1491 = vst [vmem:[%s1469 + $0x140] sm:$0xff] %v1490
                  %v1492 = vld [vmem:[%s1468 + $0x58] sm:$0xff]
                  %1493 = vst [vmem:[%s1469 + $0x160] sm:$0xff] %v1492
                  %v1494 = vld [vmem:[%s1468 + $0x60] sm:$0xff]
                  %1495 = vst [vmem:[%s1469 + $0x180] sm:$0xff] %v1494
                  %v1496 = vld [vmem:[%s1468 + $0x68] sm:$0xff]
                  %1497 = vst [vmem:[%s1469 + $0x1a0] sm:$0xff] %v1496
                  %v1498 = vld [vmem:[%s1468 + $0x70] sm:$0xff]
                  %1499 = vst [vmem:[%s1469 + $0x1c0] sm:$0xff] %v1498
                  %v1500 = vld [vmem:[%s1468 + $0x78] sm:$0xff]
                  %1501 = vst [vmem:[%s1469 + $0x1e0] sm:$0xff] %v1500
                $region84: #{model_forward.1} parent=78 // loop_footer
                  %s1467 = sadd.s32 1, %s1463
                $region85: #{model_forward.1} parent=78 // loop_footer_branch
                  %1462 = sbr.rel target = $region81
                $region86: #{model_forward.1} parent=78 // loop_exit
                  _
              $region79: #{model_forward.1} parent=63 // pred_fallthru
                _
              // Predicated region
              $region87: #{model_forward.1} parent=63 // pred_check
                _
              $region88: #{model_forward.1} parent=63 // pred_check_branch
                %1503 = sbr.rel target = $region90
              $region89: #{model_forward.1} parent=63 // pred_region
                _
              $region90: #{model_forward.1} parent=63 // pred_fallthru
                _
            $region64: #{model_forward.1} parent=59 // pred_fallthru
              _
            // Predicated region
            $region65: #{model_forward.1} parent=59 // pred_check
              _
            $region66: #{model_forward.1} parent=59 // pred_check_branch
              %1418 = sbr.rel target = $region68
            $region67: #{model_forward.1} parent=59 // pred_region
              loop: start=0, step=1, limit=1
              $region69: #{model_forward.1} parent=67 // loop_pre_header
                _
              $region70: #{model_forward.1} parent=67 // loop_header
                %s1421 = sphi 0, %s1425
                %p1422 = scmp.ge.s32.totalorder %s1421, 1
                %s1426 = sphi %s1407, %s1407
                %s1427 = sphi %s1412, %s1412
              $region71: #{model_forward.1} parent=67 // loop_header_branch
                %1424 = sbr.rel (%p1422) target = $region75
              $region72: #{model_forward.1} parent=67 // loop_body
                %v1428 = vld [vmem:[%s1426] sm:$0xff]
                %1429 = vst [vmem:[%s1427] sm:$0xff] %v1428
                %v1430 = vld [vmem:[%s1426 + $0x8] sm:$0xff]
                %1431 = vst [vmem:[%s1427 + $0x20] sm:$0xff] %v1430
                %v1432 = vld [vmem:[%s1426 + $0x10] sm:$0xff]
                %1433 = vst [vmem:[%s1427 + $0x40] sm:$0xff] %v1432
                %v1434 = vld [vmem:[%s1426 + $0x18] sm:$0xff]
                %1435 = vst [vmem:[%s1427 + $0x60] sm:$0xff] %v1434
                %v1436 = vld [vmem:[%s1426 + $0x20] sm:$0xff]
                %1437 = vst [vmem:[%s1427 + $0x80] sm:$0xff] %v1436
                %v1438 = vld [vmem:[%s1426 + $0x28] sm:$0xff]
                %1439 = vst [vmem:[%s1427 + $0xa0] sm:$0xff] %v1438
                %v1440 = vld [vmem:[%s1426 + $0x30] sm:$0xff]
                %1441 = vst [vmem:[%s1427 + $0xc0] sm:$0xff] %v1440
                %v1442 = vld [vmem:[%s1426 + $0x38] sm:$0xff]
                %1443 = vst [vmem:[%s1427 + $0xe0] sm:$0xff] %v1442
                %v1444 = vld [vmem:[%s1426 + $0x40] sm:$0xff]
                %1445 = vst [vmem:[%s1427 + $0x100] sm:$0xff] %v1444
                %v1446 = vld [vmem:[%s1426 + $0x48] sm:$0xff]
                %1447 = vst [vmem:[%s1427 + $0x120] sm:$0xff] %v1446
                %v1448 = vld [vmem:[%s1426 + $0x50] sm:$0xff]
                %1449 = vst [vmem:[%s1427 + $0x140] sm:$0xff] %v1448
                %v1450 = vld [vmem:[%s1426 + $0x58] sm:$0xff]
                %1451 = vst [vmem:[%s1427 + $0x160] sm:$0xff] %v1450
                %v1452 = vld [vmem:[%s1426 + $0x60] sm:$0xff]
                %1453 = vst [vmem:[%s1427 + $0x180] sm:$0xff] %v1452
                %v1454 = vld [vmem:[%s1426 + $0x68] sm:$0xff]
                %1455 = vst [vmem:[%s1427 + $0x1a0] sm:$0xff] %v1454
                %v1456 = vld [vmem:[%s1426 + $0x70] sm:$0xff]
                %1457 = vst [vmem:[%s1427 + $0x1c0] sm:$0xff] %v1456
                %v1458 = vld [vmem:[%s1426 + $0x78] sm:$0xff]
                %1459 = vst [vmem:[%s1427 + $0x1e0] sm:$0xff] %v1458
              $region73: #{model_forward.1} parent=67 // loop_footer
                %s1425 = sadd.s32 1, %s1421
              $region74: #{model_forward.1} parent=67 // loop_footer_branch
                %1420 = sbr.rel target = $region70
              $region75: #{model_forward.1} parent=67 // loop_exit
                _
            $region68: #{model_forward.1} parent=59 // pred_fallthru
              _
          $region60: #{model_forward.1} parent=55 // pred_fallthru
            _
          %1504 = vnop
        $region56: #{model_forward.1} parent=51 // pred_fallthru
          _
      $region52: #{model_forward.1} parent=5 // pred_fallthru
        _
      %p1505 = scmp.le.s32.totalorder 2, %s14
      // Predicated region
      $region91: #{model_forward.1} parent=5 // pred_check
        %p1506 = pneg %p1505
      $region92: #{model_forward.1} parent=5 // pred_check_branch
        %1508 = sbr.rel (%p1506) target = $region94
      $region93: #{model_forward.1} parent=5 // pred_region
        %s1509 = ssub.s32 %s14, 2
        // Predicated region
        $region95: #{model_forward.1} parent=93 // pred_check
          %p1510 = pneg %p221
        $region96: #{model_forward.1} parent=93 // pred_check_branch
          %1512 = sbr.rel (%p1510) target = $region98
        $region97: #{model_forward.1} parent=93 // pred_region
          %s1513 = sand.u32 %s206, 1
          %s1514 = sand.u32 %s206, 1
          %s1515 = smul.addr %s1514, 128
          %s1516 = scalar_lea.vmem [#allocation2], %s1515
        $region98: #{model_forward.1} parent=93 // pred_fallthru
          _
      $region94: #{model_forward.1} parent=5 // pred_fallthru
        _
    $region6: #{model_forward.1} parent=1 // loop_footer
      %s18 = sadd.s32 1, %s14
    $region7: #{model_forward.1} parent=1 // loop_footer_branch
      %13 = sbr.rel target = $region3
    $region8: #{model_forward.1} parent=1 // loop_exit
      _

</llo_original>
